<compile_context>
chip_gen: v7x
topology: tpu7x:2x2x1
jax: 0.10.0
libtpu: 0.0.40
codegen_flags: <defaults>
</compile_context>

<pallas_src>
import jax
import jax.numpy as jnp
from jax.experimental import pallas as pl
from jax.experimental.pallas import tpu as pltpu


# ----------------------------------------------------------------------------------------
# Shared in-kernel helper: depthwise 3x3 conv (stride 1, zero pad 1, cross-correlation as
# in PyTorch) on a channels-on-sublanes / flattened-HW-on-lanes tile.
#   x    : (TC, H*W) f32
#   taps : (TC, 9)   f32, tap index k = ky*3 + kx
# Halo handling is fused: tap (dy, dx) is a circular lane roll by -(dy*W + dx) of the one
# loaded tile, masked where the source pixel would fall outside the image.
# ----------------------------------------------------------------------------------------
def _dwconv3x3_flat(x, taps, h, w):
    hw = h * w
    pos = jax.lax.broadcasted_iota(jnp.int32, (1, hw), 1)
    col = pos % w
    row_ok = {-1: pos >= w, 0: None, 1: pos < (h - 1) * w}
    col_ok = {-1: col >= 1, 0: None, 1: col <= (w - 2)}

    acc = jnp.zeros_like(x)
    for ky in range(3):
        dy = ky - 1
        for kx in range(3):
            dx = kx - 1
            k = ky * 3 + kx
            d = dy * w + dx
            shifted = x if d == 0 else pltpu.roll(x, shift=(-d) % hw, axis=1)
            mask = None
            if row_ok[dy] is not None:
                mask = row_ok[dy]
            if col_ok[dx] is not None:
                mask = col_ok[dx] if mask is None else (mask & col_ok[dx])
            if mask is not None:
                shifted = jnp.where(mask, shifted, 0.0)
            acc = acc + shifted * taps[:, k:k + 1]
    return acc


# ----------------------------------------------------------------------------------------
# Kernel 1: depthwise conv + partial BN statistics (per sample, per channel block).
# ----------------------------------------------------------------------------------------
def _make_stats_kernel(h, w):
    def kernel(x_ref, t_ref, sum_ref, sq_ref):
        x = x_ref[0].astype(jnp.float32)          # (TC, H*W), force f32 accumulation
        taps = t_ref[...].astype(jnp.float32)     # (TC, 9)
        acc = _dwconv3x3_flat(x, taps, h, w)
        sum_ref[0] = jnp.sum(acc, axis=1, keepdims=True)          # (TC, 1)
        sq_ref[0] = jnp.sum(acc * acc, axis=1, keepdims=True)     # (TC, 1)
    return kernel


# ----------------------------------------------------------------------------------------
# Kernel 2: recompute the conv and apply the BN affine (y = conv * scale + shift).
# ----------------------------------------------------------------------------------------
def _make_apply_kernel(h, w):
    def kernel(x_ref, t_ref, ss_ref, o_ref):
        x = x_ref[0].astype(jnp.float32)
        taps = t_ref[...].astype(jnp.float32)
        acc = _dwconv3x3_flat(x, taps, h, w)
        scale = ss_ref[:, 0:1].astype(jnp.float32)   # (TC, 1), broadcast along lanes
        shift = ss_ref[:, 1:2].astype(jnp.float32)
        o_ref[0] = (acc * scale + shift).astype(o_ref.dtype)
    return kernel


# ----------------------------------------------------------------------------------------
# Tiling / compiler-parameter helpers.
# ----------------------------------------------------------------------------------------
def _pick_channel_tile(c, hw, budget_bytes=2 * 1024 * 1024):
    """Largest channel tile that divides C, is a multiple of 8 (or == C), and keeps one
    (TC, H*W) f32 block within a byte budget so double-buffered I/O blocks stay well
    below every generation's scoped-VMEM limit (incl. v7x's 64 MiB physical VMEM)."""
    cands = [d for d in range(8, c + 1, 8) if c % d == 0]
    if not cands:
        return c                       # C < 8 or no multiple-of-8 divisor: whole C block
    fitting = [d for d in cands if d * hw * 4 <= budget_bytes]
    if fitting:
        return fitting[-1]
    # TODO(synk): spatial (H) tiling with a 2-row halo for very large H*W images; fall
    # back to the smallest channel tile and raise the scoped-VMEM limit below instead.
    return cands[0]


def _compiler_params(tc, hw, n_streamed_blocks):
    blk = tc * hw * 4
    # Rough footprint: double-buffered streamed blocks + in-kernel f32 temporaries + slack.
    need = (2 * n_streamed_blocks + 6) * blk + (1 << 20)
    kwargs = dict(dimension_semantics=("parallel", "parallel"))
    if need > 12 * 1024 * 1024:        # above v5e's default scoped limit -> raise explicitly
        kwargs["vmem_limit_bytes"] = int(min(need, 56 * 1024 * 1024))  # headroom on v7x
    return pltpu.CompilerParams(**kwargs)


# ----------------------------------------------------------------------------------------
# Full forward (NCHW in, NCHW out — same semantics as the PyTorch module's forward).
# ----------------------------------------------------------------------------------------
def channel_learnable_pool2d_forward(params, x, eps=1e-5):
    n, c, h, w = x.shape
    hw = h * w
    x_flat = x.reshape(n, c, hw)                  # free reshape: NCHW is contiguous
    taps = params["conv_w"].reshape(c, 9)         # (C, 9), tap index k = ky*3 + kx

    tc = _pick_channel_tile(c, hw)
    num_cb = c // tc
    grid = (num_cb, n)                            # batch innermost -> taps DMA reused

    # Pass 1: conv + per-(sample, channel) partial statistics (tiny f32 outputs).
    sum_nc, sq_nc = pl.pallas_call(
        _make_stats_kernel(h, w),
        out_shape=(jax.ShapeDtypeStruct((n, c, 1), jnp.float32),
                   jax.ShapeDtypeStruct((n, c, 1), jnp.float32)),
        grid=grid,
        in_specs=[
            pl.BlockSpec((1, tc, hw), lambda cb, b: (b, cb, 0)),
            pl.BlockSpec((tc, 9), lambda cb, b: (cb, 0)),
        ],
        out_specs=(
            pl.BlockSpec((1, tc, 1), lambda cb, b: (b, cb, 0)),
            pl.BlockSpec((1, tc, 1), lambda cb, b: (b, cb, 0)),
        ),
        compiler_params=_compiler_params(tc, hw, n_streamed_blocks=1),
    )(x_flat, taps)

    # Tiny [C]-sized BatchNorm2d training-mode statistics (biased variance), in JAX.
    cnt = jnp.float32(n * hw)
    mean = jnp.sum(sum_nc[..., 0], axis=0) / cnt
    # TODO(synk): E[x^2]-E[x]^2 in f32 can lose precision when |mean| >> std; a
    # Welford-style combine would be more robust at the cost of extra per-block state.
    var = jnp.maximum(jnp.sum(sq_nc[..., 0], axis=0) / cnt - mean * mean, 0.0)
    scale = params["gamma"].astype(jnp.float32) * jax.lax.rsqrt(var + eps)
    shift = params["beta"].astype(jnp.float32) - mean * scale
    ss = jnp.stack([scale, shift], axis=1)        # (C, 2)

    # Pass 2: recompute the conv (cheaper than round-tripping an HBM intermediate in a
    # mem-bound pipeline) and apply the BN affine; single lane-dense write of the output.
    y_flat = pl.pallas_call(
        _make_apply_kernel(h, w),
        out_shape=jax.ShapeDtypeStruct((n, c, hw), x.dtype),
        grid=grid,
        in_specs=[
            pl.BlockSpec((1, tc, hw), lambda cb, b: (b, cb, 0)),
            pl.BlockSpec((tc, 9), lambda cb, b: (cb, 0)),
            pl.BlockSpec((tc, 2), lambda cb, b: (cb, 0)),
        ],
        out_specs=pl.BlockSpec((1, tc, hw), lambda cb, b: (b, cb, 0)),
        compiler_params=_compiler_params(tc, hw, n_streamed_blocks=2),
    )(x_flat, taps, ss)

    # TODO(synk): running_mean / running_var / num_batches_tracked buffer updates of
    # nn.BatchNorm2d are stateful training bookkeeping and are not materialized here.
    return y_flat.reshape(n, c, h, w)


# ----------------------------------------------------------------------------------------
# Pure-JAX reference for correctness checking.
# ----------------------------------------------------------------------------------------
def channel_learnable_pool2d_reference(params, x, eps=1e-5):
    c = x.shape[1]
    out = jax.lax.conv_general_dilated(
        x, params["conv_w"], window_strides=(1, 1), padding=((1, 1), (1, 1)),
        dimension_numbers=("NCHW", "OIHW", "NCHW"), feature_group_count=c)
    mean = jnp.mean(out, axis=(0, 2, 3), keepdims=True)
    var = jnp.mean(jnp.square(out - mean), axis=(0, 2, 3), keepdims=True)
    normed = (out - mean) * jax.lax.rsqrt(var + eps)
    return (normed * params["gamma"][None, :, None, None]
            + params["beta"][None, :, None, None])


def init_params(key, dim):
    # Conv2d(dim, dim, 3, groups=dim, padding=1, bias=False) weight: (dim, 1, 3, 3).
    # BatchNorm2d default init: gamma = 1, beta = 0.
    return {
        "conv_w": jax.random.normal(key, (dim, 1, 3, 3), jnp.float32) * (1.0 / 3.0),
        "gamma": jnp.ones((dim,), jnp.float32),
        "beta": jnp.zeros((dim,), jnp.float32),
    }


if __name__ == "__main__":
    # C = 32 keeps the channel tile a multiple of 8 sublanes; H*W = 256 = 2 full lane
    # vregs, so every activation load/store is lane-dense and unmasked.
    N, C, H, W = 2, 32, 16, 16

    key = jax.random.PRNGKey(0)
    k_param, k_x = jax.random.split(key)
    params = init_params(k_param, C)
    x = jax.random.normal(k_x, (N, C, H, W), jnp.float32)

    fwd = jax.jit(channel_learnable_pool2d_forward)
    out = fwd(params, x)
    jax.block_until_ready(out)

    ref = channel_learnable_pool2d_reference(params, x)

    assert out.shape == (N, C, H, W)
    err = float(jnp.max(jnp.abs(out - ref)))
    assert jnp.allclose(out, ref, rtol=2e-4, atol=2e-4), err

    print("KERNEL_OK")
</pallas_src>

<mosaic_0001>
module attributes {stable_mosaic.version = 11 : i64} {
  func.func @kernel(%arg0: i32, %arg1: i32, %arg2: memref<1x32x256xf32, #tpu.memory_space<vmem>>, %arg3: memref<32x9xf32, #tpu.memory_space<vmem>>, %arg4: memref<1x32x1xf32, #tpu.memory_space<vmem>>, %arg5: memref<1x32x1xf32, #tpu.memory_space<vmem>>) attributes {dimension_semantics = [#tpu.dimension_semantics<parallel>, #tpu.dimension_semantics<parallel>], iteration_bounds = array<i64: 1, 2>, scalar_prefetch = 0 : i64, scratch_operands = 0 : i64, tpu.core_type = #tpu.core_type<tc>, window_params = [{transform_indices = @transform_0, window_bounds = array<i64: 1, 32, 256>}, {transform_indices = @transform_1, window_bounds = array<i64: 32, 9>}, {transform_indices = @transform_2, window_bounds = array<i64: 1, 32, 1>}, {transform_indices = @transform_3, window_bounds = array<i64: 1, 32, 1>}]} {
    %c0 = arith.constant 0 : index
    %c0_0 = arith.constant 0 : index
    %c0_1 = arith.constant 0 : index
    %0 = vector.load %arg2[%c0, %c0_0, %c0_1] : memref<1x32x256xf32, #tpu.memory_space<vmem>>, vector<1x32x256xf32>
    %1 = vector.shape_cast %0 : vector<1x32x256xf32> to vector<32x256xf32>
    %c0_2 = arith.constant 0 : index
    %c0_3 = arith.constant 0 : index
    %2 = vector.load %arg3[%c0_2, %c0_3] : memref<32x9xf32, #tpu.memory_space<vmem>>, vector<32x9xf32>
    %3 = tpu.iota {dimensions = array<i32: 1>} : vector<1x256xi32>
    %c16_i32 = arith.constant 16 : i32
    %c0_i32 = arith.constant 0 : i32
    %4 = arith.cmpi eq, %c16_i32, %c0_i32 : i32
    %c1_i32 = arith.constant 1 : i32
    %5 = arith.select %4, %c1_i32, %c16_i32 : i32
    %6 = vector.broadcast %5 : i32 to vector<1x256xi32>
    %7 = arith.remsi %3, %6 : vector<1x256xi32>
    %c0_i32_4 = arith.constant 0 : i32
    %8 = vector.broadcast %c0_i32_4 : i32 to vector<1x256xi32>
    %9 = arith.cmpi ne, %7, %8 : vector<1x256xi32>
    %c0_i32_5 = arith.constant 0 : i32
    %10 = vector.broadcast %c0_i32_5 : i32 to vector<1x256xi32>
    %11 = arith.cmpi slt, %7, %10 : vector<1x256xi32>
    %c0_i32_6 = arith.constant 0 : i32
    %12 = arith.cmpi slt, %5, %c0_i32_6 : i32
    %13 = vector.broadcast %12 : i1 to vector<1x256xi1>
    %14 = vector.broadcast %13 : vector<1x256xi1> to vector<1x256xi1>
    %15 = arith.xori %11, %14 : vector<1x256xi1>
    %16 = arith.andi %15, %9 : vector<1x256xi1>
    %17 = vector.broadcast %5 : i32 to vector<1x256xi32>
    %18 = arith.addi %7, %17 : vector<1x256xi32>
    %19 = arith.select %16, %18, %7 : vector<1x256xi1>, vector<1x256xi32>
    %c16_i32_7 = arith.constant 16 : i32
    %20 = vector.broadcast %c16_i32_7 : i32 to vector<1x256xi32>
    %21 = arith.cmpi sge, %3, %20 : vector<1x256xi32>
    %c240_i32 = arith.constant 240 : i32
    %22 = vector.broadcast %c240_i32 : i32 to vector<1x256xi32>
    %23 = arith.cmpi slt, %3, %22 : vector<1x256xi32>
    %c1_i32_8 = arith.constant 1 : i32
    %24 = vector.broadcast %c1_i32_8 : i32 to vector<1x256xi32>
    %25 = arith.cmpi sge, %19, %24 : vector<1x256xi32>
    %c14_i32 = arith.constant 14 : i32
    %26 = vector.broadcast %c14_i32 : i32 to vector<1x256xi32>
    %27 = arith.cmpi sle, %19, %26 : vector<1x256xi32>
    %cst = arith.constant 0.000000e+00 : f32
    %28 = vector.broadcast %cst : f32 to vector<32x256xf32>
    %c17_i32 = arith.constant 17 : i32
    %29 = tpu.dynamic_rotate %1 by %c17_i32 dim 1 : vector<32x256xf32>, i32 -> vector<32x256xf32>
    %30 = arith.andi %21, %25 : vector<1x256xi1>
    %cst_9 = arith.constant 0.000000e+00 : f32
    %31 = vector.shape_cast %30 : vector<1x256xi1> to vector<1x256xi1>
    %32 = vector.broadcast %31 : vector<1x256xi1> to vector<32x256xi1>
    %33 = vector.broadcast %cst_9 : f32 to vector<32x256xf32>
    %34 = arith.select %32, %29, %33 : vector<32x256xi1>, vector<32x256xf32>
    %35 = vector.extract_strided_slice %2 {offsets = [0, 0], sizes = [32, 1], strides = [1, 1]} : vector<32x9xf32> to vector<32x1xf32>
    %36 = vector.broadcast %35 : vector<32x1xf32> to vector<32x256xf32>
    %37 = arith.mulf %34, %36 : vector<32x256xf32>
    %38 = arith.addf %28, %37 : vector<32x256xf32>
    %c16_i32_10 = arith.constant 16 : i32
    %39 = tpu.dynamic_rotate %1 by %c16_i32_10 dim 1 : vector<32x256xf32>, i32 -> vector<32x256xf32>
    %cst_11 = arith.constant 0.000000e+00 : f32
    %40 = vector.shape_cast %21 : vector<1x256xi1> to vector<1x256xi1>
    %41 = vector.broadcast %40 : vector<1x256xi1> to vector<32x256xi1>
    %42 = vector.broadcast %cst_11 : f32 to vector<32x256xf32>
    %43 = arith.select %41, %39, %42 : vector<32x256xi1>, vector<32x256xf32>
    %44 = vector.extract_strided_slice %2 {offsets = [0, 1], sizes = [32, 1], strides = [1, 1]} : vector<32x9xf32> to vector<32x1xf32>
    %45 = vector.broadcast %44 : vector<32x1xf32> to vector<32x256xf32>
    %46 = arith.mulf %43, %45 : vector<32x256xf32>
    %47 = arith.addf %38, %46 : vector<32x256xf32>
    %c15_i32 = arith.constant 15 : i32
    %48 = tpu.dynamic_rotate %1 by %c15_i32 dim 1 : vector<32x256xf32>, i32 -> vector<32x256xf32>
    %49 = arith.andi %21, %27 : vector<1x256xi1>
    %cst_12 = arith.constant 0.000000e+00 : f32
    %50 = vector.shape_cast %49 : vector<1x256xi1> to vector<1x256xi1>
    %51 = vector.broadcast %50 : vector<1x256xi1> to vector<32x256xi1>
    %52 = vector.broadcast %cst_12 : f32 to vector<32x256xf32>
    %53 = arith.select %51, %48, %52 : vector<32x256xi1>, vector<32x256xf32>
    %54 = vector.extract_strided_slice %2 {offsets = [0, 2], sizes = [32, 1], strides = [1, 1]} : vector<32x9xf32> to vector<32x1xf32>
    %55 = vector.broadcast %54 : vector<32x1xf32> to vector<32x256xf32>
    %56 = arith.mulf %53, %55 : vector<32x256xf32>
    %57 = arith.addf %47, %56 : vector<32x256xf32>
    %c1_i32_13 = arith.constant 1 : i32
    %58 = tpu.dynamic_rotate %1 by %c1_i32_13 dim 1 : vector<32x256xf32>, i32 -> vector<32x256xf32>
    %cst_14 = arith.constant 0.000000e+00 : f32
    %59 = vector.shape_cast %25 : vector<1x256xi1> to vector<1x256xi1>
    %60 = vector.broadcast %59 : vector<1x256xi1> to vector<32x256xi1>
    %61 = vector.broadcast %cst_14 : f32 to vector<32x256xf32>
    %62 = arith.select %60, %58, %61 : vector<32x256xi1>, vector<32x256xf32>
    %63 = vector.extract_strided_slice %2 {offsets = [0, 3], sizes = [32, 1], strides = [1, 1]} : vector<32x9xf32> to vector<32x1xf32>
    %64 = vector.broadcast %63 : vector<32x1xf32> to vector<32x256xf32>
    %65 = arith.mulf %62, %64 : vector<32x256xf32>
    %66 = arith.addf %57, %65 : vector<32x256xf32>
    %67 = vector.extract_strided_slice %2 {offsets = [0, 4], sizes = [32, 1], strides = [1, 1]} : vector<32x9xf32> to vector<32x1xf32>
    %68 = vector.broadcast %67 : vector<32x1xf32> to vector<32x256xf32>
    %69 = arith.mulf %1, %68 : vector<32x256xf32>
    %70 = arith.addf %66, %69 : vector<32x256xf32>
    %c255_i32 = arith.constant 255 : i32
    %71 = tpu.dynamic_rotate %1 by %c255_i32 dim 1 : vector<32x256xf32>, i32 -> vector<32x256xf32>
    %cst_15 = arith.constant 0.000000e+00 : f32
    %72 = vector.shape_cast %27 : vector<1x256xi1> to vector<1x256xi1>
    %73 = vector.broadcast %72 : vector<1x256xi1> to vector<32x256xi1>
    %74 = vector.broadcast %cst_15 : f32 to vector<32x256xf32>
    %75 = arith.select %73, %71, %74 : vector<32x256xi1>, vector<32x256xf32>
    %76 = vector.extract_strided_slice %2 {offsets = [0, 5], sizes = [32, 1], strides = [1, 1]} : vector<32x9xf32> to vector<32x1xf32>
    %77 = vector.broadcast %76 : vector<32x1xf32> to vector<32x256xf32>
    %78 = arith.mulf %75, %77 : vector<32x256xf32>
    %79 = arith.addf %70, %78 : vector<32x256xf32>
    %c241_i32 = arith.constant 241 : i32
    %80 = tpu.dynamic_rotate %1 by %c241_i32 dim 1 : vector<32x256xf32>, i32 -> vector<32x256xf32>
    %81 = arith.andi %23, %25 : vector<1x256xi1>
    %cst_16 = arith.constant 0.000000e+00 : f32
    %82 = vector.shape_cast %81 : vector<1x256xi1> to vector<1x256xi1>
    %83 = vector.broadcast %82 : vector<1x256xi1> to vector<32x256xi1>
    %84 = vector.broadcast %cst_16 : f32 to vector<32x256xf32>
    %85 = arith.select %83, %80, %84 : vector<32x256xi1>, vector<32x256xf32>
    %86 = vector.extract_strided_slice %2 {offsets = [0, 6], sizes = [32, 1], strides = [1, 1]} : vector<32x9xf32> to vector<32x1xf32>
    %87 = vector.broadcast %86 : vector<32x1xf32> to vector<32x256xf32>
    %88 = arith.mulf %85, %87 : vector<32x256xf32>
    %89 = arith.addf %79, %88 : vector<32x256xf32>
    %c240_i32_17 = arith.constant 240 : i32
    %90 = tpu.dynamic_rotate %1 by %c240_i32_17 dim 1 : vector<32x256xf32>, i32 -> vector<32x256xf32>
    %cst_18 = arith.constant 0.000000e+00 : f32
    %91 = vector.shape_cast %23 : vector<1x256xi1> to vector<1x256xi1>
    %92 = vector.broadcast %91 : vector<1x256xi1> to vector<32x256xi1>
    %93 = vector.broadcast %cst_18 : f32 to vector<32x256xf32>
    %94 = arith.select %92, %90, %93 : vector<32x256xi1>, vector<32x256xf32>
    %95 = vector.extract_strided_slice %2 {offsets = [0, 7], sizes = [32, 1], strides = [1, 1]} : vector<32x9xf32> to vector<32x1xf32>
    %96 = vector.broadcast %95 : vector<32x1xf32> to vector<32x256xf32>
    %97 = arith.mulf %94, %96 : vector<32x256xf32>
    %98 = arith.addf %89, %97 : vector<32x256xf32>
    %c239_i32 = arith.constant 239 : i32
    %99 = tpu.dynamic_rotate %1 by %c239_i32 dim 1 : vector<32x256xf32>, i32 -> vector<32x256xf32>
    %100 = arith.andi %23, %27 : vector<1x256xi1>
    %cst_19 = arith.constant 0.000000e+00 : f32
    %101 = vector.shape_cast %100 : vector<1x256xi1> to vector<1x256xi1>
    %102 = vector.broadcast %101 : vector<1x256xi1> to vector<32x256xi1>
    %103 = vector.broadcast %cst_19 : f32 to vector<32x256xf32>
    %104 = arith.select %102, %99, %103 : vector<32x256xi1>, vector<32x256xf32>
    %105 = vector.extract_strided_slice %2 {offsets = [0, 8], sizes = [32, 1], strides = [1, 1]} : vector<32x9xf32> to vector<32x1xf32>
    %106 = vector.broadcast %105 : vector<32x1xf32> to vector<32x256xf32>
    %107 = arith.mulf %104, %106 : vector<32x256xf32>
    %108 = arith.addf %98, %107 : vector<32x256xf32>
    %cst_20 = arith.constant dense<0.000000e+00> : vector<32xf32>
    %109 = vector.multi_reduction <add>, %108, %cst_20 [1] : vector<32x256xf32> to vector<32xf32>
    %110 = vector.shape_cast %109 : vector<32xf32> to vector<32x1xf32>
    %c0_21 = arith.constant 0 : index
    %c0_22 = arith.constant 0 : index
    %c0_23 = arith.constant 0 : index
    %111 = vector.load %arg4[%c0_21, %c0_22, %c0_23] : memref<1x32x1xf32, #tpu.memory_space<vmem>>, vector<1x32x1xf32>
    %112 = vector.shape_cast %111 : vector<1x32x1xf32> to vector<32x1xf32>
    %113 = vector.shape_cast %110 : vector<32x1xf32> to vector<1x32x1xf32>
    tpu.vector_store %arg4[%c0_21, %c0_22, %c0_23], %113 {strides = array<i32>} : memref<1x32x1xf32, #tpu.memory_space<vmem>>, vector<1x32x1xf32>,
    %114 = arith.mulf %108, %108 : vector<32x256xf32>
    %cst_24 = arith.constant dense<0.000000e+00> : vector<32xf32>
    %115 = vector.multi_reduction <add>, %114, %cst_24 [1] : vector<32x256xf32> to vector<32xf32>
    %116 = vector.shape_cast %115 : vector<32xf32> to vector<32x1xf32>
    %c0_25 = arith.constant 0 : index
    %c0_26 = arith.constant 0 : index
    %c0_27 = arith.constant 0 : index
    %117 = vector.load %arg5[%c0_25, %c0_26, %c0_27] : memref<1x32x1xf32, #tpu.memory_space<vmem>>, vector<1x32x1xf32>
    %118 = vector.shape_cast %117 : vector<1x32x1xf32> to vector<32x1xf32>
    %119 = vector.shape_cast %116 : vector<32x1xf32> to vector<1x32x1xf32>
    tpu.vector_store %arg5[%c0_25, %c0_26, %c0_27], %119 {strides = array<i32>} : memref<1x32x1xf32, #tpu.memory_space<vmem>>, vector<1x32x1xf32>,
    return
  }
  func.func @transform_0(%arg0: i32, %arg1: i32) -> (i32, i32, i32) {
    %c0_i32 = arith.constant 0 : i32
    %c0_i32_0 = arith.constant 0 : i32
    return %arg1, %arg0, %c0_i32 : i32, i32, i32
  }
  func.func @transform_1(%arg0: i32, %arg1: i32) -> (i32, i32) {
    %c0_i32 = arith.constant 0 : i32
    %c0_i32_0 = arith.constant 0 : i32
    return %arg0, %c0_i32 : i32, i32
  }
  func.func @transform_2(%arg0: i32, %arg1: i32) -> (i32, i32, i32) {
    %c0_i32 = arith.constant 0 : i32
    %c0_i32_0 = arith.constant 0 : i32
    return %arg1, %arg0, %c0_i32 : i32, i32, i32
  }
  func.func @transform_3(%arg0: i32, %arg1: i32) -> (i32, i32, i32) {
    %c0_i32 = arith.constant 0 : i32
    %c0_i32_0 = arith.constant 0 : i32
    return %arg1, %arg0, %c0_i32 : i32, i32, i32
  }
}

module attributes {stable_mosaic.version = 11 : i64} {
  func.func @kernel(%arg0: i32, %arg1: i32, %arg2: memref<1x32x256xf32, #tpu.memory_space<vmem>>, %arg3: memref<32x9xf32, #tpu.memory_space<vmem>>, %arg4: memref<32x2xf32, #tpu.memory_space<vmem>>, %arg5: memref<1x32x256xf32, #tpu.memory_space<vmem>>) attributes {dimension_semantics = [#tpu.dimension_semantics<parallel>, #tpu.dimension_semantics<parallel>], iteration_bounds = array<i64: 1, 2>, scalar_prefetch = 0 : i64, scratch_operands = 0 : i64, tpu.core_type = #tpu.core_type<tc>, window_params = [{transform_indices = @transform_0, window_bounds = array<i64: 1, 32, 256>}, {transform_indices = @transform_1, window_bounds = array<i64: 32, 9>}, {transform_indices = @transform_2, window_bounds = array<i64: 32, 2>}, {transform_indices = @transform_3, window_bounds = array<i64: 1, 32, 256>}]} {
    %c0 = arith.constant 0 : index
    %c0_0 = arith.constant 0 : index
    %c0_1 = arith.constant 0 : index
    %0 = vector.load %arg2[%c0, %c0_0, %c0_1] : memref<1x32x256xf32, #tpu.memory_space<vmem>>, vector<1x32x256xf32>
    %1 = vector.shape_cast %0 : vector<1x32x256xf32> to vector<32x256xf32>
    %c0_2 = arith.constant 0 : index
    %c0_3 = arith.constant 0 : index
    %2 = vector.load %arg3[%c0_2, %c0_3] : memref<32x9xf32, #tpu.memory_space<vmem>>, vector<32x9xf32>
    %3 = tpu.iota {dimensions = array<i32: 1>} : vector<1x256xi32>
    %c16_i32 = arith.constant 16 : i32
    %c0_i32 = arith.constant 0 : i32
    %4 = arith.cmpi eq, %c16_i32, %c0_i32 : i32
    %c1_i32 = arith.constant 1 : i32
    %5 = arith.select %4, %c1_i32, %c16_i32 : i32
    %6 = vector.broadcast %5 : i32 to vector<1x256xi32>
    %7 = arith.remsi %3, %6 : vector<1x256xi32>
    %c0_i32_4 = arith.constant 0 : i32
    %8 = vector.broadcast %c0_i32_4 : i32 to vector<1x256xi32>
    %9 = arith.cmpi ne, %7, %8 : vector<1x256xi32>
    %c0_i32_5 = arith.constant 0 : i32
    %10 = vector.broadcast %c0_i32_5 : i32 to vector<1x256xi32>
    %11 = arith.cmpi slt, %7, %10 : vector<1x256xi32>
    %c0_i32_6 = arith.constant 0 : i32
    %12 = arith.cmpi slt, %5, %c0_i32_6 : i32
    %13 = vector.broadcast %12 : i1 to vector<1x256xi1>
    %14 = vector.broadcast %13 : vector<1x256xi1> to vector<1x256xi1>
    %15 = arith.xori %11, %14 : vector<1x256xi1>
    %16 = arith.andi %15, %9 : vector<1x256xi1>
    %17 = vector.broadcast %5 : i32 to vector<1x256xi32>
    %18 = arith.addi %7, %17 : vector<1x256xi32>
    %19 = arith.select %16, %18, %7 : vector<1x256xi1>, vector<1x256xi32>
    %c16_i32_7 = arith.constant 16 : i32
    %20 = vector.broadcast %c16_i32_7 : i32 to vector<1x256xi32>
    %21 = arith.cmpi sge, %3, %20 : vector<1x256xi32>
    %c240_i32 = arith.constant 240 : i32
    %22 = vector.broadcast %c240_i32 : i32 to vector<1x256xi32>
    %23 = arith.cmpi slt, %3, %22 : vector<1x256xi32>
    %c1_i32_8 = arith.constant 1 : i32
    %24 = vector.broadcast %c1_i32_8 : i32 to vector<1x256xi32>
    %25 = arith.cmpi sge, %19, %24 : vector<1x256xi32>
    %c14_i32 = arith.constant 14 : i32
    %26 = vector.broadcast %c14_i32 : i32 to vector<1x256xi32>
    %27 = arith.cmpi sle, %19, %26 : vector<1x256xi32>
    %cst = arith.constant 0.000000e+00 : f32
    %28 = vector.broadcast %cst : f32 to vector<32x256xf32>
    %c17_i32 = arith.constant 17 : i32
    %29 = tpu.dynamic_rotate %1 by %c17_i32 dim 1 : vector<32x256xf32>, i32 -> vector<32x256xf32>
    %30 = arith.andi %21, %25 : vector<1x256xi1>
    %cst_9 = arith.constant 0.000000e+00 : f32
    %31 = vector.shape_cast %30 : vector<1x256xi1> to vector<1x256xi1>
    %32 = vector.broadcast %31 : vector<1x256xi1> to vector<32x256xi1>
    %33 = vector.broadcast %cst_9 : f32 to vector<32x256xf32>
    %34 = arith.select %32, %29, %33 : vector<32x256xi1>, vector<32x256xf32>
    %35 = vector.extract_strided_slice %2 {offsets = [0, 0], sizes = [32, 1], strides = [1, 1]} : vector<32x9xf32> to vector<32x1xf32>
    %36 = vector.broadcast %35 : vector<32x1xf32> to vector<32x256xf32>
    %37 = arith.mulf %34, %36 : vector<32x256xf32>
    %38 = arith.addf %28, %37 : vector<32x256xf32>
    %c16_i32_10 = arith.constant 16 : i32
    %39 = tpu.dynamic_rotate %1 by %c16_i32_10 dim 1 : vector<32x256xf32>, i32 -> vector<32x256xf32>
    %cst_11 = arith.constant 0.000000e+00 : f32
    %40 = vector.shape_cast %21 : vector<1x256xi1> to vector<1x256xi1>
    %41 = vector.broadcast %40 : vector<1x256xi1> to vector<32x256xi1>
    %42 = vector.broadcast %cst_11 : f32 to vector<32x256xf32>
    %43 = arith.select %41, %39, %42 : vector<32x256xi1>, vector<32x256xf32>
    %44 = vector.extract_strided_slice %2 {offsets = [0, 1], sizes = [32, 1], strides = [1, 1]} : vector<32x9xf32> to vector<32x1xf32>
    %45 = vector.broadcast %44 : vector<32x1xf32> to vector<32x256xf32>
    %46 = arith.mulf %43, %45 : vector<32x256xf32>
    %47 = arith.addf %38, %46 : vector<32x256xf32>
    %c15_i32 = arith.constant 15 : i32
    %48 = tpu.dynamic_rotate %1 by %c15_i32 dim 1 : vector<32x256xf32>, i32 -> vector<32x256xf32>
    %49 = arith.andi %21, %27 : vector<1x256xi1>
    %cst_12 = arith.constant 0.000000e+00 : f32
    %50 = vector.shape_cast %49 : vector<1x256xi1> to vector<1x256xi1>
    %51 = vector.broadcast %50 : vector<1x256xi1> to vector<32x256xi1>
    %52 = vector.broadcast %cst_12 : f32 to vector<32x256xf32>
    %53 = arith.select %51, %48, %52 : vector<32x256xi1>, vector<32x256xf32>
    %54 = vector.extract_strided_slice %2 {offsets = [0, 2], sizes = [32, 1], strides = [1, 1]} : vector<32x9xf32> to vector<32x1xf32>
    %55 = vector.broadcast %54 : vector<32x1xf32> to vector<32x256xf32>
    %56 = arith.mulf %53, %55 : vector<32x256xf32>
    %57 = arith.addf %47, %56 : vector<32x256xf32>
    %c1_i32_13 = arith.constant 1 : i32
    %58 = tpu.dynamic_rotate %1 by %c1_i32_13 dim 1 : vector<32x256xf32>, i32 -> vector<32x256xf32>
    %cst_14 = arith.constant 0.000000e+00 : f32
    %59 = vector.shape_cast %25 : vector<1x256xi1> to vector<1x256xi1>
    %60 = vector.broadcast %59 : vector<1x256xi1> to vector<32x256xi1>
    %61 = vector.broadcast %cst_14 : f32 to vector<32x256xf32>
    %62 = arith.select %60, %58, %61 : vector<32x256xi1>, vector<32x256xf32>
    %63 = vector.extract_strided_slice %2 {offsets = [0, 3], sizes = [32, 1], strides = [1, 1]} : vector<32x9xf32> to vector<32x1xf32>
    %64 = vector.broadcast %63 : vector<32x1xf32> to vector<32x256xf32>
    %65 = arith.mulf %62, %64 : vector<32x256xf32>
    %66 = arith.addf %57, %65 : vector<32x256xf32>
    %67 = vector.extract_strided_slice %2 {offsets = [0, 4], sizes = [32, 1], strides = [1, 1]} : vector<32x9xf32> to vector<32x1xf32>
    %68 = vector.broadcast %67 : vector<32x1xf32> to vector<32x256xf32>
    %69 = arith.mulf %1, %68 : vector<32x256xf32>
    %70 = arith.addf %66, %69 : vector<32x256xf32>
    %c255_i32 = arith.constant 255 : i32
    %71 = tpu.dynamic_rotate %1 by %c255_i32 dim 1 : vector<32x256xf32>, i32 -> vector<32x256xf32>
    %cst_15 = arith.constant 0.000000e+00 : f32
    %72 = vector.shape_cast %27 : vector<1x256xi1> to vector<1x256xi1>
    %73 = vector.broadcast %72 : vector<1x256xi1> to vector<32x256xi1>
    %74 = vector.broadcast %cst_15 : f32 to vector<32x256xf32>
    %75 = arith.select %73, %71, %74 : vector<32x256xi1>, vector<32x256xf32>
    %76 = vector.extract_strided_slice %2 {offsets = [0, 5], sizes = [32, 1], strides = [1, 1]} : vector<32x9xf32> to vector<32x1xf32>
    %77 = vector.broadcast %76 : vector<32x1xf32> to vector<32x256xf32>
    %78 = arith.mulf %75, %77 : vector<32x256xf32>
    %79 = arith.addf %70, %78 : vector<32x256xf32>
    %c241_i32 = arith.constant 241 : i32
    %80 = tpu.dynamic_rotate %1 by %c241_i32 dim 1 : vector<32x256xf32>, i32 -> vector<32x256xf32>
    %81 = arith.andi %23, %25 : vector<1x256xi1>
    %cst_16 = arith.constant 0.000000e+00 : f32
    %82 = vector.shape_cast %81 : vector<1x256xi1> to vector<1x256xi1>
    %83 = vector.broadcast %82 : vector<1x256xi1> to vector<32x256xi1>
    %84 = vector.broadcast %cst_16 : f32 to vector<32x256xf32>
    %85 = arith.select %83, %80, %84 : vector<32x256xi1>, vector<32x256xf32>
    %86 = vector.extract_strided_slice %2 {offsets = [0, 6], sizes = [32, 1], strides = [1, 1]} : vector<32x9xf32> to vector<32x1xf32>
    %87 = vector.broadcast %86 : vector<32x1xf32> to vector<32x256xf32>
    %88 = arith.mulf %85, %87 : vector<32x256xf32>
    %89 = arith.addf %79, %88 : vector<32x256xf32>
    %c240_i32_17 = arith.constant 240 : i32
    %90 = tpu.dynamic_rotate %1 by %c240_i32_17 dim 1 : vector<32x256xf32>, i32 -> vector<32x256xf32>
    %cst_18 = arith.constant 0.000000e+00 : f32
    %91 = vector.shape_cast %23 : vector<1x256xi1> to vector<1x256xi1>
    %92 = vector.broadcast %91 : vector<1x256xi1> to vector<32x256xi1>
    %93 = vector.broadcast %cst_18 : f32 to vector<32x256xf32>
    %94 = arith.select %92, %90, %93 : vector<32x256xi1>, vector<32x256xf32>
    %95 = vector.extract_strided_slice %2 {offsets = [0, 7], sizes = [32, 1], strides = [1, 1]} : vector<32x9xf32> to vector<32x1xf32>
    %96 = vector.broadcast %95 : vector<32x1xf32> to vector<32x256xf32>
    %97 = arith.mulf %94, %96 : vector<32x256xf32>
    %98 = arith.addf %89, %97 : vector<32x256xf32>
    %c239_i32 = arith.constant 239 : i32
    %99 = tpu.dynamic_rotate %1 by %c239_i32 dim 1 : vector<32x256xf32>, i32 -> vector<32x256xf32>
    %100 = arith.andi %23, %27 : vector<1x256xi1>
    %cst_19 = arith.constant 0.000000e+00 : f32
    %101 = vector.shape_cast %100 : vector<1x256xi1> to vector<1x256xi1>
    %102 = vector.broadcast %101 : vector<1x256xi1> to vector<32x256xi1>
    %103 = vector.broadcast %cst_19 : f32 to vector<32x256xf32>
    %104 = arith.select %102, %99, %103 : vector<32x256xi1>, vector<32x256xf32>
    %105 = vector.extract_strided_slice %2 {offsets = [0, 8], sizes = [32, 1], strides = [1, 1]} : vector<32x9xf32> to vector<32x1xf32>
    %106 = vector.broadcast %105 : vector<32x1xf32> to vector<32x256xf32>
    %107 = arith.mulf %104, %106 : vector<32x256xf32>
    %108 = arith.addf %98, %107 : vector<32x256xf32>
    %c0_20 = arith.constant 0 : index
    %c0_21 = arith.constant 0 : index
    %109 = vector.load %arg4[%c0_20, %c0_21] : memref<32x2xf32, #tpu.memory_space<vmem>>, vector<32x1xf32>
    %c0_22 = arith.constant 0 : index
    %c1 = arith.constant 1 : index
    %110 = vector.load %arg4[%c0_22, %c1] : memref<32x2xf32, #tpu.memory_space<vmem>>, vector<32x1xf32>
    %111 = vector.broadcast %109 : vector<32x1xf32> to vector<32x256xf32>
    %112 = arith.mulf %108, %111 : vector<32x256xf32>
    %113 = vector.broadcast %110 : vector<32x1xf32> to vector<32x256xf32>
    %114 = arith.addf %112, %113 : vector<32x256xf32>
    %c0_23 = arith.constant 0 : index
    %c0_24 = arith.constant 0 : index
    %c0_25 = arith.constant 0 : index
    %115 = vector.load %arg5[%c0_23, %c0_24, %c0_25] : memref<1x32x256xf32, #tpu.memory_space<vmem>>, vector<1x32x256xf32>
    %116 = vector.shape_cast %115 : vector<1x32x256xf32> to vector<32x256xf32>
    %117 = vector.shape_cast %114 : vector<32x256xf32> to vector<1x32x256xf32>
    tpu.vector_store %arg5[%c0_23, %c0_24, %c0_25], %117 {strides = array<i32>} : memref<1x32x256xf32, #tpu.memory_space<vmem>>, vector<1x32x256xf32>,
    return
  }
  func.func @transform_0(%arg0: i32, %arg1: i32) -> (i32, i32, i32) {
    %c0_i32 = arith.constant 0 : i32
    %c0_i32_0 = arith.constant 0 : i32
    return %arg1, %arg0, %c0_i32 : i32, i32, i32
  }
  func.func @transform_1(%arg0: i32, %arg1: i32) -> (i32, i32) {
    %c0_i32 = arith.constant 0 : i32
    %c0_i32_0 = arith.constant 0 : i32
    return %arg0, %c0_i32 : i32, i32
  }
  func.func @transform_2(%arg0: i32, %arg1: i32) -> (i32, i32) {
    %c0_i32 = arith.constant 0 : i32
    %c0_i32_0 = arith.constant 0 : i32
    return %arg0, %c0_i32 : i32, i32
  }
  func.func @transform_3(%arg0: i32, %arg1: i32) -> (i32, i32, i32) {
    %c0_i32 = arith.constant 0 : i32
    %c0_i32_0 = arith.constant 0 : i32
    return %arg1, %arg0, %c0_i32 : i32, i32, i32
  }
}

</mosaic_0001>

<llo_original>
// kernel: channel_learnable_pool2d_forward.2
$region0: #{channel_learnable_pool2d_forward.2}
  #allocation0 [shape = 'u32[]', space=smem, size = 0x4, offset = 0x4, fixed_abs, tag = 'smem constant byte address 0x4 - core index']
  #allocation1 [shape = 'u32[144,128]{1,0:T(1,128)}', space=vmem, size = 0x12000, scoped, tag = 'internal scratch']
  %s0 = inlined_call_operand.vmem [shape: f32[2,32,256], index: 0, kind: input, shape index: {}]
  %s1 = inlined_call_operand.vmem [shape: f32[32,9], index: 1, kind: input, shape index: {}]
  %s2 = inlined_call_operand.vmem [shape: f32[2,32,1], index: 2, kind: output, shape index: {0}]
  %s3 = inlined_call_operand.vmem [shape: f32[2,32,1], index: 3, kind: output, shape index: {1}]
  %4 = xla_tuple %s2, %s3
  %s5 = sld [smem:[#allocation0]]
  $region49: #{channel_learnable_pool2d_forward.2} parent=0
    _
  %s7 = ssub.s32 1, %s5
  %s8 = scalar_select 0, %s7, %s5
  loop: start=0, step=1, limit=4
  $region2: #{channel_learnable_pool2d_forward.2} parent=0 // loop_pre_header
    _
  $region3: #{channel_learnable_pool2d_forward.2} parent=0 // loop_header
    %s10 = sphi 0, %s14
    %p11 = scmp.ge.s32.totalorder %s10, 4
    %s17 = sphi 0, %s29
    %s18 = sphi 0, %s25
    %s19 = sphi 0, %s17
    %s20 = sphi 0, %s18
    %s21 = sphi 0, %s19
    %s22 = sphi 0, %s20
    %s34 = sphi 0, %s36
    %s37 = sphi 0, %s34
    %s38 = sphi 0, %s37
    %s54 = sphi 0, %s38
    %s60 = sphi 0, %s62
    %s63 = sphi 0, %s60
    %s64 = sphi 0, %s63
    %s80 = sphi 0, %s64
    %s88 = sphi 0, %s90
    %s91 = sphi 0, %s88
    %s92 = sphi 0, %s91
    %s108 = sphi 0, %s92
    %s116 = sphi 0, %s118
    %s119 = sphi 0, %s116
    %s120 = sphi 0, %s119
    %s136 = sphi 0, %s120
  $region4: #{channel_learnable_pool2d_forward.2} parent=0 // loop_header_branch
    %13 = sbr.rel (%p11) target = $region8
  $region5: #{channel_learnable_pool2d_forward.2} parent=0 // loop_body
    %s15 = ssub.s32 %s10, 1
    %s16 = ssub.s32 %s10, 2
    %s23 = sadd.s32 1, %s18
    %p24 = scmp.ge.s32.totalorder %s23, 2
    %s25 = scalar_select %p24, 0, %s23
    %s26 = sadd.s32 1, %s17
    %s27 = scalar_select %p24, %s26, %s17
    %p28 = scmp.ge.s32.totalorder %s27, 1
    %s29 = scalar_select %p28, 0, %s27
    %s30 = ssub.s32 %s18, %s25
    %s31 = ssub.s32 %s17, %s29
    %s32 = sor.u32 %s30, %s31
    %p33 = scmp.eq.s32.totalorder %s32, 0
    %s35 = sadd.s32 %s34, 1
    %s36 = scalar_select %p33, %s34, %s35
    %p39 = pneg %p33
    %p40 = scmp.eq.s32.totalorder %s10, 1
    %p41 = por %p39, %p40
    %p42 = scmp.ne.s32.totalorder %s34, %s37
    %p43 = scmp.eq.s32.totalorder %s10, 0
    %p44 = por %p42, %p43
    %p45 = scmp.ne.s32.totalorder %s34, %s37
    %p46 = scmp.eq.s32.totalorder %s15, 1
    %p47 = por %p45, %p46
    %p48 = scmp.ne.s32.totalorder %s37, %s38
    %p49 = scmp.eq.s32.totalorder %s15, 0
    %p50 = por %p48, %p49
    %p51 = scmp.ne.s32.totalorder %s37, %s38
    %p52 = scmp.eq.s32.totalorder %s16, 1
    %p53 = por %p51, %p52
    %p55 = scmp.ne.s32.totalorder %s38, %s54
    %p56 = scmp.eq.s32.totalorder %s16, 0
    %p57 = por %p55, %p56
    %s58 = ssub.s32 %s17, %s29
    %p59 = scmp.eq.s32.totalorder %s58, 0
    %s61 = sadd.s32 %s60, 1
    %s62 = scalar_select %p59, %s60, %s61
    %p65 = pneg %p59
    %p66 = scmp.eq.s32.totalorder %s10, 1
    %p67 = por %p65, %p66
    %p68 = scmp.ne.s32.totalorder %s60, %s63
    %p69 = scmp.eq.s32.totalorder %s10, 0
    %p70 = por %p68, %p69
    %p71 = scmp.ne.s32.totalorder %s60, %s63
    %p72 = scmp.eq.s32.totalorder %s15, 1
    %p73 = por %p71, %p72
    %p74 = scmp.ne.s32.totalorder %s63, %s64
    %p75 = scmp.eq.s32.totalorder %s15, 0
    %p76 = por %p74, %p75
    %p77 = scmp.ne.s32.totalorder %s63, %s64
    %p78 = scmp.eq.s32.totalorder %s16, 1
    %p79 = por %p77, %p78
    %p81 = scmp.ne.s32.totalorder %s64, %s80
    %p82 = scmp.eq.s32.totalorder %s16, 0
    %p83 = por %p81, %p82
    %s84 = ssub.s32 %s18, %s25
    %s85 = ssub.s32 %s17, %s29
    %s86 = sor.u32 %s84, %s85
    %p87 = scmp.eq.s32.totalorder %s86, 0
    %s89 = sadd.s32 %s88, 1
    %s90 = scalar_select %p87, %s88, %s89
    %p93 = pneg %p87
    %p94 = scmp.eq.s32.totalorder %s10, 1
    %p95 = por %p93, %p94
    %p96 = scmp.ne.s32.totalorder %s88, %s91
    %p97 = scmp.eq.s32.totalorder %s10, 0
    %p98 = por %p96, %p97
    %p99 = scmp.ne.s32.totalorder %s88, %s91
    %p100 = scmp.eq.s32.totalorder %s15, 1
    %p101 = por %p99, %p100
    %p102 = scmp.ne.s32.totalorder %s91, %s92
    %p103 = scmp.eq.s32.totalorder %s15, 0
    %p104 = por %p102, %p103
    %p105 = scmp.ne.s32.totalorder %s91, %s92
    %p106 = scmp.eq.s32.totalorder %s16, 1
    %p107 = por %p105, %p106
    %p109 = scmp.ne.s32.totalorder %s92, %s108
    %p110 = scmp.eq.s32.totalorder %s16, 0
    %p111 = por %p109, %p110
    %s112 = ssub.s32 %s18, %s25
    %s113 = ssub.s32 %s17, %s29
    %s114 = sor.u32 %s112, %s113
    %p115 = scmp.eq.s32.totalorder %s114, 0
    %s117 = sadd.s32 %s116, 1
    %s118 = scalar_select %p115, %s116, %s117
    %p121 = pneg %p115
    %p122 = scmp.eq.s32.totalorder %s10, 1
    %p123 = por %p121, %p122
    %p124 = scmp.ne.s32.totalorder %s116, %s119
    %p125 = scmp.eq.s32.totalorder %s10, 0
    %p126 = por %p124, %p125
    %p127 = scmp.ne.s32.totalorder %s116, %s119
    %p128 = scmp.eq.s32.totalorder %s15, 1
    %p129 = por %p127, %p128
    %p130 = scmp.ne.s32.totalorder %s119, %s120
    %p131 = scmp.eq.s32.totalorder %s15, 0
    %p132 = por %p130, %p131
    %p133 = scmp.ne.s32.totalorder %s119, %s120
    %p134 = scmp.eq.s32.totalorder %s16, 1
    %p135 = por %p133, %p134
    %p137 = scmp.ne.s32.totalorder %s120, %s136
    %p138 = scmp.eq.s32.totalorder %s16, 0
    %p139 = por %p137, %p138
    %p140 = scmp.le.s32.totalorder 1, %s10
    %p141 = scmp.lt.s32.totalorder %s10, 3
    %p142 = pnand %p140, %p141
    %p143 = pneg %p142
    // Predicated region
    $region9: #{channel_learnable_pool2d_forward.2} parent=5 // pred_check
      _
    $region10: #{channel_learnable_pool2d_forward.2} parent=5 // pred_check_branch
      %145 = sbr.rel (%p142) target = $region12
    $region11: #{channel_learnable_pool2d_forward.2} parent=5 // pred_region
      %s146 = ssub.s32 %s10, 1
      // Predicated region
      $region13: #{channel_learnable_pool2d_forward.2} parent=11 // pred_check
        %p147 = pneg %p76
      $region14: #{channel_learnable_pool2d_forward.2} parent=11 // pred_check_branch
        %149 = sbr.rel (%p147) target = $region16
      $region15: #{channel_learnable_pool2d_forward.2} parent=11 // pred_region
        %s150 = smul.u32 4, %s19
        %p151 = scmp.lt.s32.totalorder %s150, 3
        %s152 = scalar_select %p151, %s150, 3
        %s153 = smul.addr %s152, 8
        %s154 = scalar_lea.vmem %s1, %s153
        %s155 = smul.u32 4, %s19
      $region16: #{channel_learnable_pool2d_forward.2} parent=11 // pred_fallthru
        _
    $region12: #{channel_learnable_pool2d_forward.2} parent=5 // pred_fallthru
      _
    %p156 = scmp.lt.s32.totalorder %s10, 2
    // Predicated region
    $region17: #{channel_learnable_pool2d_forward.2} parent=5 // pred_check
      %p157 = pneg %p156
    $region18: #{channel_learnable_pool2d_forward.2} parent=5 // pred_check_branch
      %159 = sbr.rel (%p157) target = $region20
    $region19: #{channel_learnable_pool2d_forward.2} parent=5 // pred_region
      // Predicated region
      $region21: #{channel_learnable_pool2d_forward.2} parent=19 // pred_check
        %p160 = pneg %p44
      $region22: #{channel_learnable_pool2d_forward.2} parent=19 // pred_check_branch
        %162 = sbr.rel (%p160) target = $region24
      $region23: #{channel_learnable_pool2d_forward.2} parent=19 // pred_region
        %s163 = smul.u32 4, %s17
        %p164 = scmp.lt.s32.totalorder %s18, 1
        %s165 = scalar_select %p164, %s18, 1
        %p166 = scmp.lt.s32.totalorder %s163, 3
        %s167 = scalar_select %p166, %s163, 3
        %s168 = smul.addr %s167, 2
        %s169 = smul.addr %s165, 8
        %s170 = sadd.s32 %s168, %s169
        %s171 = smul.addr %s170, 8
        %s172 = scalar_lea.vmem %s0, %s171
        %s173 = smul.u32 4, %s17
      $region24: #{channel_learnable_pool2d_forward.2} parent=19 // pred_fallthru
        _
    $region20: #{channel_learnable_pool2d_forward.2} parent=5 // pred_fallthru
      _
    %p174 = scmp.le.s32.totalorder 1, %s10
    %p175 = scmp.lt.s32.totalorder %s10, 3
    %p176 = pnand %p174, %p175
    %p177 = pneg %p176
    // Predicated region
    $region25: #{channel_learnable_pool2d_forward.2} parent=5 // pred_check
      _
    $region26: #{channel_learnable_pool2d_forward.2} parent=5 // pred_check_branch
      %179 = sbr.rel (%p176) target = $region28
    $region27: #{channel_learnable_pool2d_forward.2} parent=5 // pred_region
      %s180 = ssub.s32 %s10, 1
      %s181 = smul.u32 4, %s19
      %p182 = scmp.lt.s32.totalorder %s20, 1
      %s183 = scalar_select %p182, %s20, 1
      %p184 = scmp.lt.s32.totalorder %s181, 3
      %s185 = scalar_select %p184, %s181, 3
      %s186 = smul.addr %s185, 2
      %s187 = smul.addr %s183, 8
      %s188 = sadd.s32 %s186, %s187
      %s189 = smul.addr %s188, 8
      %s190 = scalar_lea.vmem %s0, %s189
      %p191 = pneg %p50
      %p192 = pneg %p47
      %s193 = smul.u32 4, %s19
      %p194 = scmp.lt.s32.totalorder %s193, 3
      %s195 = scalar_select %p194, %s193, 3
      %s196 = smul.addr %s195, 8
      %s197 = scalar_lea.vmem %s1, %s196
      %p198 = pneg %p76
      %p199 = pneg %p73
      %p200 = pneg %p104
      %p201 = pneg %p101
      %s202 = smul.u32 4, %s19
      %p203 = scmp.lt.s32.totalorder %s20, 1
      %s204 = scalar_select %p203, %s20, 1
      %p205 = scmp.lt.s32.totalorder %s202, 3
      %s206 = scalar_select %p205, %s202, 3
      %s207 = smul.addr %s204, 4
      %s208 = sadd.s32 %s206, %s207
      %s209 = smul.addr %s208, 8
      %s210 = scalar_lea.vmem %s2, %s209
      %p211 = pneg %p132
      %p212 = pneg %p129
      %s213 = smul.u32 4, %s19
      %p214 = scmp.lt.s32.totalorder %s20, 1
      %s215 = scalar_select %p214, %s20, 1
      %p216 = scmp.lt.s32.totalorder %s213, 3
      %s217 = scalar_select %p216, %s213, 3
      %s218 = smul.addr %s215, 4
      %s219 = sadd.s32 %s217, %s218
      %s220 = smul.addr %s219, 8
      %s221 = scalar_lea.vmem %s3, %s220
      %s222 = smul.u32 4, %s19
      %p223 = scmp.lt.s32.totalorder %s20, 1
      %s224 = scalar_select %p223, %s20, 1
      %p225 = scmp.lt.s32.totalorder %s222, 3
      %s226 = scalar_select %p225, %s222, 3
      %s227 = smul.addr %s226, 2
      %s228 = smul.addr %s224, 8
      %s229 = sadd.s32 %s227, %s228
      %s230 = smul.addr %s229, 8
      %s231 = scalar_lea.vmem %s0, %s230
      %s232 = smul.u32 4, %s19
      %s233 = smul.u32 4, %s19
      %p234 = scmp.lt.s32.totalorder %s233, 3
      %s235 = scalar_select %p234, %s233, 3
      %s236 = smul.addr %s235, 8
      %s237 = scalar_lea.vmem %s1, %s236
      %s238 = smul.u32 4, %s19
      %s239 = smul.u32 4, %s19
      %p240 = scmp.lt.s32.totalorder %s20, 1
      %s241 = scalar_select %p240, %s20, 1
      %p242 = scmp.lt.s32.totalorder %s239, 3
      %s243 = scalar_select %p242, %s239, 3
      %s244 = smul.addr %s241, 4
      %s245 = sadd.s32 %s243, %s244
      %s246 = smul.addr %s245, 8
      %s247 = scalar_lea.vmem %s2, %s246
      %s248 = smul.u32 4, %s19
      %s249 = smul.u32 4, %s19
      %p250 = scmp.lt.s32.totalorder %s20, 1
      %s251 = scalar_select %p250, %s20, 1
      %p252 = scmp.lt.s32.totalorder %s249, 3
      %s253 = scalar_select %p252, %s249, 3
      %s254 = smul.addr %s251, 4
      %s255 = sadd.s32 %s253, %s254
      %s256 = smul.addr %s255, 8
      %s257 = scalar_lea.vmem %s3, %s256
      %s258 = smul.u32 4, %s19
      %v259 = vld [vmem:[%s231] sm:$0xff]
      %v260 = vld [vmem:[%s231 + $0x8] sm:$0xff]
      %v261 = vld [vmem:[%s231 + $0x10] sm:$0xff]
      %v262 = vld [vmem:[%s231 + $0x18] sm:$0xff]
      %v263 = vld [vmem:[%s231 + $0x20] sm:$0xff]
      %v264 = vld [vmem:[%s231 + $0x28] sm:$0xff]
      %v265 = vld [vmem:[%s231 + $0x30] sm:$0xff]
      %v266 = vld [vmem:[%s231 + $0x38] sm:$0xff]
      %v267 = vld [vmem:[%s237] sm:$0xff]
      %v268 = vld [vmem:[%s237 + $0x8] sm:$0xff]
      %v269 = vld [vmem:[%s237 + $0x10] sm:$0xff]
      %v270 = vld [vmem:[%s237 + $0x18] sm:$0xff]
      %v271 = vlaneseq
      %v272 = vand.u32 %v271, 127
      %v273 = vadd.s32 %v272, 128
      %vm274 = vcmp.lt.s32.totalorder %v272, 0
      %v275 = vsub.s32 0, %v272
      %v276 = vsel %vm274, %v275, %v272
      %v277 = vshrl.u32 %v276, 4
      %v278 = vand.u32 %v276, 15
      %v279 = vsub.s32 0, %v278
      %v280 = vsel %vm274, %v279, %v278
      %vm281 = vcmp.lt.s32.totalorder %v273, 0
      %v282 = vsub.s32 0, %v273
      %v283 = vsel %vm281, %v282, %v273
      %v284 = vshrl.u32 %v283, 4
      %v285 = vand.u32 %v283, 15
      %v286 = vsub.s32 0, %v285
      %v287 = vsel %vm281, %v286, %v285
      %vm288 = vcmp.ne.s32.totalorder %v280, 0
      %vm289 = vcmp.ne.s32.totalorder %v287, 0
      %vm290 = vcmp.lt.s32.totalorder %v280, 0
      %vm291 = vcmp.lt.s32.totalorder %v287, 0
      %vm292 = vmand %vm290, %vm288
      %vm293 = vmand %vm291, %vm289
      %v294 = vadd.s32 %v280, 16
      %v295 = vadd.s32 %v287, 16
      %v296 = vsel %vm292, %v294, %v280
      %v297 = vsel %vm293, %v295, %v287
      %vm298 = vcmp.ge.s32.totalorder %v272, 16
      %vm299 = vcmp.ge.s32.totalorder %v273, 16
      %vm300 = vcmp.lt.s32.totalorder %v272, 240
      %vm301 = vcmp.lt.s32.totalorder %v273, 240
      %vm302 = vcmp.ge.s32.totalorder %v296, 1
      %vm303 = vcmp.ge.s32.totalorder %v297, 1
      %vm304 = vcmp.le.s32.totalorder %v296, 14
      %vm305 = vcmp.le.s32.totalorder %v297, 14
      %306 = vrot.lane.b32.xlu0 %v259, 17
      %v307 = vpop.permute.xlu0 %306
      %308 = vrot.lane.b32.xlu0 %v261, 17
      %v309 = vpop.permute.xlu0 %308
      %310 = vrot.lane.b32.xlu0 %v263, 17
      %v311 = vpop.permute.xlu0 %310
      %312 = vrot.lane.b32.xlu0 %v265, 17
      %v313 = vpop.permute.xlu0 %312
      %314 = vrot.lane.b32.xlu0 %v260, 17
      %v315 = vpop.permute.xlu0 %314
      %316 = vrot.lane.b32.xlu0 %v262, 17
      %v317 = vpop.permute.xlu0 %316
      %318 = vrot.lane.b32.xlu0 %v264, 17
      %v319 = vpop.permute.xlu0 %318
      %320 = vrot.lane.b32.xlu0 %v266, 17
      %v321 = vpop.permute.xlu0 %320
      %vm322 = vcmp.lt.s32.totalorder %v272, 17
      %v323 = vsel %vm322, %v307, %v315
      %v324 = vsel %vm322, %v309, %v317
      %v325 = vsel %vm322, %v311, %v319
      %v326 = vsel %vm322, %v313, %v321
      %v327 = vsel %vm322, %v315, %v307
      %v328 = vsel %vm322, %v317, %v309
      %v329 = vsel %vm322, %v319, %v311
      %v330 = vsel %vm322, %v321, %v313
      %vm331 = vmand %vm298, %vm302
      %vm332 = vmand %vm299, %vm303
      %v333 = vsel %vm331, 1, 0
      %v334 = vsel %vm332, 1, 0
      %vm335 = vcmp.eq.s32.totalorder %v333, 1
      %vm336 = vcmp.eq.s32.totalorder %v334, 1
      %v337 = vsel %vm335, %v327, 0.0
      %v338 = vsel %vm336, %v323, 0.0
      %v339 = vsel %vm335, %v328, 0.0
      %v340 = vsel %vm336, %v324, 0.0
      %v341 = vsel %vm335, %v329, 0.0
      %v342 = vsel %vm336, %v325, 0.0
      %v343 = vsel %vm335, %v330, 0.0
      %v344 = vsel %vm336, %v326, 0.0
      %346 = vset.pattern.permute.xlu0 0
      %347 = vperm.xlu0 %346, %v267
      %v348 = vpop.permute.xlu0 %347
      %351 = vset.pattern.permute.xlu0 0
      %352 = vperm.xlu0 %351, %v268
      %v353 = vpop.permute.xlu0 %352
      %356 = vset.pattern.permute.xlu0 0
      %357 = vperm.xlu0 %356, %v269
      %v358 = vpop.permute.xlu0 %357
      %361 = vset.pattern.permute.xlu0 0
      %362 = vperm.xlu0 %361, %v270
      %v363 = vpop.permute.xlu0 %362
      %v365 = vmul.f32 %v337, %v348
      %v366 = vmul.f32 %v338, %v348
      %v367 = vmul.f32 %v339, %v353
      %v368 = vmul.f32 %v340, %v353
      %v369 = vmul.f32 %v341, %v358
      %v370 = vmul.f32 %v342, %v358
      %v371 = vmul.f32 %v343, %v363
      %v372 = vmul.f32 %v344, %v363
      %v373 = vadd.f32 %v365, 0.0
      %v374 = vadd.f32 %v366, 0.0
      %v375 = vadd.f32 %v367, 0.0
      %v376 = vadd.f32 %v368, 0.0
      %v377 = vadd.f32 %v369, 0.0
      %v378 = vadd.f32 %v370, 0.0
      %v379 = vadd.f32 %v371, 0.0
      %v380 = vadd.f32 %v372, 0.0
      %381 = vrot.lane.b32.xlu0 %v259, 16
      %v382 = vpop.permute.xlu0 %381
      %383 = vrot.lane.b32.xlu0 %v261, 16
      %v384 = vpop.permute.xlu0 %383
      %385 = vrot.lane.b32.xlu0 %v263, 16
      %v386 = vpop.permute.xlu0 %385
      %387 = vrot.lane.b32.xlu0 %v265, 16
      %v388 = vpop.permute.xlu0 %387
      %389 = vrot.lane.b32.xlu0 %v260, 16
      %v390 = vpop.permute.xlu0 %389
      %391 = vrot.lane.b32.xlu0 %v262, 16
      %v392 = vpop.permute.xlu0 %391
      %393 = vrot.lane.b32.xlu0 %v264, 16
      %v394 = vpop.permute.xlu0 %393
      %395 = vrot.lane.b32.xlu0 %v266, 16
      %v396 = vpop.permute.xlu0 %395
      %vm397 = vcmp.lt.s32.totalorder %v272, 16
      %v398 = vsel %vm397, %v382, %v390
      %v399 = vsel %vm397, %v384, %v392
      %v400 = vsel %vm397, %v386, %v394
      %v401 = vsel %vm397, %v388, %v396
      %v402 = vsel %vm397, %v390, %v382
      %v403 = vsel %vm397, %v392, %v384
      %v404 = vsel %vm397, %v394, %v386
      %v405 = vsel %vm397, %v396, %v388
      %v406 = vsel %vm298, 1, 0
      %v407 = vsel %vm299, 1, 0
      %vm408 = vcmp.eq.s32.totalorder %v406, 1
      %vm409 = vcmp.eq.s32.totalorder %v407, 1
      %v410 = vsel %vm408, %v402, 0.0
      %v411 = vsel %vm409, %v398, 0.0
      %v412 = vsel %vm408, %v403, 0.0
      %v413 = vsel %vm409, %v399, 0.0
      %v414 = vsel %vm408, %v404, 0.0
      %v415 = vsel %vm409, %v400, 0.0
      %v416 = vsel %vm408, %v405, 0.0
      %v417 = vsel %vm409, %v401, 0.0
      %418 = vset.pattern.permute.xlu0 1
      %419 = vperm.xlu0 %418, %v267
      %v420 = vpop.permute.xlu0 %419
      %422 = vset.pattern.permute.xlu0 1
      %423 = vperm.xlu0 %422, %v268
      %v424 = vpop.permute.xlu0 %423
      %426 = vset.pattern.permute.xlu0 1
      %427 = vperm.xlu0 %426, %v269
      %v428 = vpop.permute.xlu0 %427
      %430 = vset.pattern.permute.xlu0 1
      %431 = vperm.xlu0 %430, %v270
      %v432 = vpop.permute.xlu0 %431
      %v434 = vmul.f32 %v410, %v420
      %v435 = vmul.f32 %v411, %v420
      %v436 = vmul.f32 %v412, %v424
      %v437 = vmul.f32 %v413, %v424
      %v438 = vmul.f32 %v414, %v428
      %v439 = vmul.f32 %v415, %v428
      %v440 = vmul.f32 %v416, %v432
      %v441 = vmul.f32 %v417, %v432
      %v442 = vadd.f32 %v373, %v434
      %v443 = vadd.f32 %v374, %v435
      %v444 = vadd.f32 %v375, %v436
      %v445 = vadd.f32 %v376, %v437
      %v446 = vadd.f32 %v377, %v438
      %v447 = vadd.f32 %v378, %v439
      %v448 = vadd.f32 %v379, %v440
      %v449 = vadd.f32 %v380, %v441
      %450 = vrot.lane.b32.xlu0 %v259, 15
      %v451 = vpop.permute.xlu0 %450
      %452 = vrot.lane.b32.xlu0 %v261, 15
      %v453 = vpop.permute.xlu0 %452
      %454 = vrot.lane.b32.xlu0 %v263, 15
      %v455 = vpop.permute.xlu0 %454
      %456 = vrot.lane.b32.xlu0 %v265, 15
      %v457 = vpop.permute.xlu0 %456
      %458 = vrot.lane.b32.xlu0 %v260, 15
      %v459 = vpop.permute.xlu0 %458
      %460 = vrot.lane.b32.xlu0 %v262, 15
      %v461 = vpop.permute.xlu0 %460
      %462 = vrot.lane.b32.xlu0 %v264, 15
      %v463 = vpop.permute.xlu0 %462
      %464 = vrot.lane.b32.xlu0 %v266, 15
      %v465 = vpop.permute.xlu0 %464
      %vm466 = vcmp.lt.s32.totalorder %v272, 15
      %v467 = vsel %vm466, %v451, %v459
      %v468 = vsel %vm466, %v453, %v461
      %v469 = vsel %vm466, %v455, %v463
      %v470 = vsel %vm466, %v457, %v465
      %v471 = vsel %vm466, %v459, %v451
      %v472 = vsel %vm466, %v461, %v453
      %v473 = vsel %vm466, %v463, %v455
      %v474 = vsel %vm466, %v465, %v457
      %vm475 = vmand %vm298, %vm304
      %vm476 = vmand %vm299, %vm305
      %v477 = vsel %vm475, 1, 0
      %v478 = vsel %vm476, 1, 0
      %vm479 = vcmp.eq.s32.totalorder %v477, 1
      %vm480 = vcmp.eq.s32.totalorder %v478, 1
      %v481 = vsel %vm479, %v471, 0.0
      %v482 = vsel %vm480, %v467, 0.0
      %v483 = vsel %vm479, %v472, 0.0
      %v484 = vsel %vm480, %v468, 0.0
      %v485 = vsel %vm479, %v473, 0.0
      %v486 = vsel %vm480, %v469, 0.0
      %v487 = vsel %vm479, %v474, 0.0
      %v488 = vsel %vm480, %v470, 0.0
      %489 = vset.pattern.permute.xlu0 2
      %490 = vperm.xlu0 %489, %v267
      %v491 = vpop.permute.xlu0 %490
      %493 = vset.pattern.permute.xlu0 2
      %494 = vperm.xlu0 %493, %v268
      %v495 = vpop.permute.xlu0 %494
      %497 = vset.pattern.permute.xlu0 2
      %498 = vperm.xlu0 %497, %v269
      %v499 = vpop.permute.xlu0 %498
      %501 = vset.pattern.permute.xlu0 2
      %502 = vperm.xlu0 %501, %v270
      %v503 = vpop.permute.xlu0 %502
      %v505 = vmul.f32 %v481, %v491
      %v506 = vmul.f32 %v482, %v491
      %v507 = vmul.f32 %v483, %v495
      %v508 = vmul.f32 %v484, %v495
      %v509 = vmul.f32 %v485, %v499
      %v510 = vmul.f32 %v486, %v499
      %v511 = vmul.f32 %v487, %v503
      %v512 = vmul.f32 %v488, %v503
      %v513 = vadd.f32 %v442, %v505
      %v514 = vadd.f32 %v443, %v506
      %v515 = vadd.f32 %v444, %v507
      %v516 = vadd.f32 %v445, %v508
      %v517 = vadd.f32 %v446, %v509
      %v518 = vadd.f32 %v447, %v510
      %v519 = vadd.f32 %v448, %v511
      %v520 = vadd.f32 %v449, %v512
      %521 = vrot.lane.b32.xlu0 %v259, 1
      %v522 = vpop.permute.xlu0 %521
      %523 = vrot.lane.b32.xlu0 %v261, 1
      %v524 = vpop.permute.xlu0 %523
      %525 = vrot.lane.b32.xlu0 %v263, 1
      %v526 = vpop.permute.xlu0 %525
      %527 = vrot.lane.b32.xlu0 %v265, 1
      %v528 = vpop.permute.xlu0 %527
      %529 = vrot.lane.b32.xlu0 %v260, 1
      %v530 = vpop.permute.xlu0 %529
      %531 = vrot.lane.b32.xlu0 %v262, 1
      %v532 = vpop.permute.xlu0 %531
      %533 = vrot.lane.b32.xlu0 %v264, 1
      %v534 = vpop.permute.xlu0 %533
      %535 = vrot.lane.b32.xlu0 %v266, 1
      %v536 = vpop.permute.xlu0 %535
      %vm537 = vcmp.lt.s32.totalorder %v272, 1
      %v538 = vsel %vm537, %v522, %v530
      %v539 = vsel %vm537, %v524, %v532
      %v540 = vsel %vm537, %v526, %v534
      %v541 = vsel %vm537, %v528, %v536
      %v542 = vsel %vm537, %v530, %v522
      %v543 = vsel %vm537, %v532, %v524
      %v544 = vsel %vm537, %v534, %v526
      %v545 = vsel %vm537, %v536, %v528
      %v546 = vsel %vm302, 1, 0
      %v547 = vsel %vm303, 1, 0
      %vm548 = vcmp.eq.s32.totalorder %v546, 1
      %vm549 = vcmp.eq.s32.totalorder %v547, 1
      %v550 = vsel %vm548, %v542, 0.0
      %v551 = vsel %vm549, %v538, 0.0
      %v552 = vsel %vm548, %v543, 0.0
      %v553 = vsel %vm549, %v539, 0.0
      %v554 = vsel %vm548, %v544, 0.0
      %v555 = vsel %vm549, %v540, 0.0
      %v556 = vsel %vm548, %v545, 0.0
      %v557 = vsel %vm549, %v541, 0.0
      %558 = vset.pattern.permute.xlu0 3
      %559 = vperm.xlu0 %558, %v267
      %v560 = vpop.permute.xlu0 %559
      %562 = vset.pattern.permute.xlu0 3
      %563 = vperm.xlu0 %562, %v268
      %v564 = vpop.permute.xlu0 %563
      %566 = vset.pattern.permute.xlu0 3
      %567 = vperm.xlu0 %566, %v269
      %v568 = vpop.permute.xlu0 %567
      %570 = vset.pattern.permute.xlu0 3
      %571 = vperm.xlu0 %570, %v270
      %v572 = vpop.permute.xlu0 %571
      %v574 = vmul.f32 %v550, %v560
      %v575 = vmul.f32 %v551, %v560
      %v576 = vmul.f32 %v552, %v564
      %v577 = vmul.f32 %v553, %v564
      %v578 = vmul.f32 %v554, %v568
      %v579 = vmul.f32 %v555, %v568
      %v580 = vmul.f32 %v556, %v572
      %v581 = vmul.f32 %v557, %v572
      %v582 = vadd.f32 %v513, %v574
      %v583 = vadd.f32 %v514, %v575
      %v584 = vadd.f32 %v515, %v576
      %v585 = vadd.f32 %v516, %v577
      %v586 = vadd.f32 %v517, %v578
      %v587 = vadd.f32 %v518, %v579
      %v588 = vadd.f32 %v519, %v580
      %v589 = vadd.f32 %v520, %v581
      %590 = vset.pattern.permute.xlu0 4
      %591 = vperm.xlu0 %590, %v267
      %v592 = vpop.permute.xlu0 %591
      %594 = vset.pattern.permute.xlu0 4
      %595 = vperm.xlu0 %594, %v268
      %v596 = vpop.permute.xlu0 %595
      %598 = vset.pattern.permute.xlu0 4
      %599 = vperm.xlu0 %598, %v269
      %v600 = vpop.permute.xlu0 %599
      %602 = vset.pattern.permute.xlu0 4
      %603 = vperm.xlu0 %602, %v270
      %v604 = vpop.permute.xlu0 %603
      %v606 = vmul.f32 %v259, %v592
      %v607 = vmul.f32 %v260, %v592
      %v608 = vmul.f32 %v261, %v596
      %v609 = vmul.f32 %v262, %v596
      %v610 = vmul.f32 %v263, %v600
      %v611 = vmul.f32 %v264, %v600
      %v612 = vmul.f32 %v265, %v604
      %v613 = vmul.f32 %v266, %v604
      %v614 = vadd.f32 %v582, %v606
      %v615 = vadd.f32 %v583, %v607
      %v616 = vadd.f32 %v584, %v608
      %v617 = vadd.f32 %v585, %v609
      %v618 = vadd.f32 %v586, %v610
      %v619 = vadd.f32 %v587, %v611
      %v620 = vadd.f32 %v588, %v612
      %v621 = vadd.f32 %v589, %v613
      %622 = vrot.lane.b32.xlu0 %v259, 127
      %v623 = vpop.permute.xlu0 %622
      %624 = vrot.lane.b32.xlu0 %v261, 127
      %v625 = vpop.permute.xlu0 %624
      %626 = vrot.lane.b32.xlu0 %v263, 127
      %v627 = vpop.permute.xlu0 %626
      %628 = vrot.lane.b32.xlu0 %v265, 127
      %v629 = vpop.permute.xlu0 %628
      %630 = vrot.lane.b32.xlu0 %v260, 127
      %v631 = vpop.permute.xlu0 %630
      %632 = vrot.lane.b32.xlu0 %v262, 127
      %v633 = vpop.permute.xlu0 %632
      %634 = vrot.lane.b32.xlu0 %v264, 127
      %v635 = vpop.permute.xlu0 %634
      %636 = vrot.lane.b32.xlu0 %v266, 127
      %v637 = vpop.permute.xlu0 %636
      %vm638 = vcmp.lt.s32.totalorder %v272, 127
      %v639 = vsel %vm638, %v623, %v631
      %v640 = vsel %vm638, %v625, %v633
      %v641 = vsel %vm638, %v627, %v635
      %v642 = vsel %vm638, %v629, %v637
      %v643 = vsel %vm638, %v631, %v623
      %v644 = vsel %vm638, %v633, %v625
      %v645 = vsel %vm638, %v635, %v627
      %v646 = vsel %vm638, %v637, %v629
      %v647 = vsel %vm304, 1, 0
      %v648 = vsel %vm305, 1, 0
      %vm649 = vcmp.eq.s32.totalorder %v647, 1
      %vm650 = vcmp.eq.s32.totalorder %v648, 1
      %v651 = vsel %vm649, %v639, 0.0
      %v652 = vsel %vm650, %v643, 0.0
      %v653 = vsel %vm649, %v640, 0.0
      %v654 = vsel %vm650, %v644, 0.0
      %v655 = vsel %vm649, %v641, 0.0
      %v656 = vsel %vm650, %v645, 0.0
      %v657 = vsel %vm649, %v642, 0.0
      %v658 = vsel %vm650, %v646, 0.0
      %659 = vset.pattern.permute.xlu0 5
      %660 = vperm.xlu0 %659, %v267
      %v661 = vpop.permute.xlu0 %660
      %663 = vset.pattern.permute.xlu0 5
      %664 = vperm.xlu0 %663, %v268
      %v665 = vpop.permute.xlu0 %664
      %667 = vset.pattern.permute.xlu0 5
      %668 = vperm.xlu0 %667, %v269
      %v669 = vpop.permute.xlu0 %668
      %671 = vset.pattern.permute.xlu0 5
      %672 = vperm.xlu0 %671, %v270
      %v673 = vpop.permute.xlu0 %672
      %v675 = vmul.f32 %v651, %v661
      %v676 = vmul.f32 %v652, %v661
      %v677 = vmul.f32 %v653, %v665
      %v678 = vmul.f32 %v654, %v665
      %v679 = vmul.f32 %v655, %v669
      %v680 = vmul.f32 %v656, %v669
      %v681 = vmul.f32 %v657, %v673
      %v682 = vmul.f32 %v658, %v673
      %v683 = vadd.f32 %v614, %v675
      %v684 = vadd.f32 %v615, %v676
      %v685 = vadd.f32 %v616, %v677
      %v686 = vadd.f32 %v617, %v678
      %v687 = vadd.f32 %v618, %v679
      %v688 = vadd.f32 %v619, %v680
      %v689 = vadd.f32 %v620, %v681
      %v690 = vadd.f32 %v621, %v682
      %691 = vrot.lane.b32.xlu0 %v259, 113
      %v692 = vpop.permute.xlu0 %691
      %693 = vrot.lane.b32.xlu0 %v261, 113
      %v694 = vpop.permute.xlu0 %693
      %695 = vrot.lane.b32.xlu0 %v263, 113
      %v696 = vpop.permute.xlu0 %695
      %697 = vrot.lane.b32.xlu0 %v265, 113
      %v698 = vpop.permute.xlu0 %697
      %699 = vrot.lane.b32.xlu0 %v260, 113
      %v700 = vpop.permute.xlu0 %699
      %701 = vrot.lane.b32.xlu0 %v262, 113
      %v702 = vpop.permute.xlu0 %701
      %703 = vrot.lane.b32.xlu0 %v264, 113
      %v704 = vpop.permute.xlu0 %703
      %705 = vrot.lane.b32.xlu0 %v266, 113
      %v706 = vpop.permute.xlu0 %705
      %vm707 = vcmp.lt.s32.totalorder %v272, 113
      %v708 = vsel %vm707, %v692, %v700
      %v709 = vsel %vm707, %v694, %v702
      %v710 = vsel %vm707, %v696, %v704
      %v711 = vsel %vm707, %v698, %v706
      %v712 = vsel %vm707, %v700, %v692
      %v713 = vsel %vm707, %v702, %v694
      %v714 = vsel %vm707, %v704, %v696
      %v715 = vsel %vm707, %v706, %v698
      %vm716 = vmand %vm300, %vm302
      %vm717 = vmand %vm301, %vm303
      %v718 = vsel %vm716, 1, 0
      %v719 = vsel %vm717, 1, 0
      %vm720 = vcmp.eq.s32.totalorder %v718, 1
      %vm721 = vcmp.eq.s32.totalorder %v719, 1
      %v722 = vsel %vm720, %v708, 0.0
      %v723 = vsel %vm721, %v712, 0.0
      %v724 = vsel %vm720, %v709, 0.0
      %v725 = vsel %vm721, %v713, 0.0
      %v726 = vsel %vm720, %v710, 0.0
      %v727 = vsel %vm721, %v714, 0.0
      %v728 = vsel %vm720, %v711, 0.0
      %v729 = vsel %vm721, %v715, 0.0
      %730 = vset.pattern.permute.xlu0 6
      %731 = vperm.xlu0 %730, %v267
      %v732 = vpop.permute.xlu0 %731
      %734 = vset.pattern.permute.xlu0 6
      %735 = vperm.xlu0 %734, %v268
      %v736 = vpop.permute.xlu0 %735
      %738 = vset.pattern.permute.xlu0 6
      %739 = vperm.xlu0 %738, %v269
      %v740 = vpop.permute.xlu0 %739
      %742 = vset.pattern.permute.xlu0 6
      %743 = vperm.xlu0 %742, %v270
      %v744 = vpop.permute.xlu0 %743
      %v746 = vmul.f32 %v722, %v732
      %v747 = vmul.f32 %v723, %v732
      %v748 = vmul.f32 %v724, %v736
      %v749 = vmul.f32 %v725, %v736
      %v750 = vmul.f32 %v726, %v740
      %v751 = vmul.f32 %v727, %v740
      %v752 = vmul.f32 %v728, %v744
      %v753 = vmul.f32 %v729, %v744
      %v754 = vadd.f32 %v683, %v746
      %v755 = vadd.f32 %v684, %v747
      %v756 = vadd.f32 %v685, %v748
      %v757 = vadd.f32 %v686, %v749
      %v758 = vadd.f32 %v687, %v750
      %v759 = vadd.f32 %v688, %v751
      %v760 = vadd.f32 %v689, %v752
      %v761 = vadd.f32 %v690, %v753
      %762 = vrot.lane.b32.xlu0 %v259, 112
      %v763 = vpop.permute.xlu0 %762
      %764 = vrot.lane.b32.xlu0 %v261, 112
      %v765 = vpop.permute.xlu0 %764
      %766 = vrot.lane.b32.xlu0 %v263, 112
      %v767 = vpop.permute.xlu0 %766
      %768 = vrot.lane.b32.xlu0 %v265, 112
      %v769 = vpop.permute.xlu0 %768
      %770 = vrot.lane.b32.xlu0 %v260, 112
      %v771 = vpop.permute.xlu0 %770
      %772 = vrot.lane.b32.xlu0 %v262, 112
      %v773 = vpop.permute.xlu0 %772
      %774 = vrot.lane.b32.xlu0 %v264, 112
      %v775 = vpop.permute.xlu0 %774
      %776 = vrot.lane.b32.xlu0 %v266, 112
      %v777 = vpop.permute.xlu0 %776
      %vm778 = vcmp.lt.s32.totalorder %v272, 112
      %v779 = vsel %vm778, %v763, %v771
      %v780 = vsel %vm778, %v765, %v773
      %v781 = vsel %vm778, %v767, %v775
      %v782 = vsel %vm778, %v769, %v777
      %v783 = vsel %vm778, %v771, %v763
      %v784 = vsel %vm778, %v773, %v765
      %v785 = vsel %vm778, %v775, %v767
      %v786 = vsel %vm778, %v777, %v769
      %v787 = vsel %vm300, 1, 0
      %v788 = vsel %vm301, 1, 0
      %vm789 = vcmp.eq.s32.totalorder %v787, 1
      %vm790 = vcmp.eq.s32.totalorder %v788, 1
      %v791 = vsel %vm789, %v779, 0.0
      %v792 = vsel %vm790, %v783, 0.0
      %v793 = vsel %vm789, %v780, 0.0
      %v794 = vsel %vm790, %v784, 0.0
      %v795 = vsel %vm789, %v781, 0.0
      %v796 = vsel %vm790, %v785, 0.0
      %v797 = vsel %vm789, %v782, 0.0
      %v798 = vsel %vm790, %v786, 0.0
      %799 = vset.pattern.permute.xlu0 7
      %800 = vperm.xlu0 %799, %v267
      %v801 = vpop.permute.xlu0 %800
      %803 = vset.pattern.permute.xlu0 7
      %804 = vperm.xlu0 %803, %v268
      %v805 = vpop.permute.xlu0 %804
      %807 = vset.pattern.permute.xlu0 7
      %808 = vperm.xlu0 %807, %v269
      %v809 = vpop.permute.xlu0 %808
      %811 = vset.pattern.permute.xlu0 7
      %812 = vperm.xlu0 %811, %v270
      %v813 = vpop.permute.xlu0 %812
      %v815 = vmul.f32 %v791, %v801
      %v816 = vmul.f32 %v792, %v801
      %v817 = vmul.f32 %v793, %v805
      %v818 = vmul.f32 %v794, %v805
      %v819 = vmul.f32 %v795, %v809
      %v820 = vmul.f32 %v796, %v809
      %v821 = vmul.f32 %v797, %v813
      %v822 = vmul.f32 %v798, %v813
      %v823 = vadd.f32 %v754, %v815
      %v824 = vadd.f32 %v755, %v816
      %v825 = vadd.f32 %v756, %v817
      %v826 = vadd.f32 %v757, %v818
      %v827 = vadd.f32 %v758, %v819
      %v828 = vadd.f32 %v759, %v820
      %v829 = vadd.f32 %v760, %v821
      %v830 = vadd.f32 %v761, %v822
      %831 = vrot.lane.b32.xlu0 %v259, 111
      %v832 = vpop.permute.xlu0 %831
      %833 = vrot.lane.b32.xlu0 %v261, 111
      %v834 = vpop.permute.xlu0 %833
      %835 = vrot.lane.b32.xlu0 %v263, 111
      %v836 = vpop.permute.xlu0 %835
      %837 = vrot.lane.b32.xlu0 %v265, 111
      %v838 = vpop.permute.xlu0 %837
      %839 = vrot.lane.b32.xlu0 %v260, 111
      %v840 = vpop.permute.xlu0 %839
      %841 = vrot.lane.b32.xlu0 %v262, 111
      %v842 = vpop.permute.xlu0 %841
      %843 = vrot.lane.b32.xlu0 %v264, 111
      %v844 = vpop.permute.xlu0 %843
      %845 = vrot.lane.b32.xlu0 %v266, 111
      %v846 = vpop.permute.xlu0 %845
      %vm847 = vcmp.lt.s32.totalorder %v272, 111
      %v848 = vsel %vm847, %v832, %v840
      %v849 = vsel %vm847, %v834, %v842
      %v850 = vsel %vm847, %v836, %v844
      %v851 = vsel %vm847, %v838, %v846
      %v852 = vsel %vm847, %v840, %v832
      %v853 = vsel %vm847, %v842, %v834
      %v854 = vsel %vm847, %v844, %v836
      %v855 = vsel %vm847, %v846, %v838
      %vm856 = vmand %vm300, %vm304
      %vm857 = vmand %vm301, %vm305
      %v858 = vsel %vm856, 1, 0
      %v859 = vsel %vm857, 1, 0
      %vm860 = vcmp.eq.s32.totalorder %v858, 1
      %vm861 = vcmp.eq.s32.totalorder %v859, 1
      %v862 = vsel %vm860, %v848, 0.0
      %v863 = vsel %vm861, %v852, 0.0
      %v864 = vsel %vm860, %v849, 0.0
      %v865 = vsel %vm861, %v853, 0.0
      %v866 = vsel %vm860, %v850, 0.0
      %v867 = vsel %vm861, %v854, 0.0
      %v868 = vsel %vm860, %v851, 0.0
      %v869 = vsel %vm861, %v855, 0.0
      %870 = vset.pattern.permute.xlu0 8
      %871 = vperm.xlu0 %870, %v267
      %v872 = vpop.permute.xlu0 %871
      %874 = vset.pattern.permute.xlu0 8
      %875 = vperm.xlu0 %874, %v268
      %v876 = vpop.permute.xlu0 %875
      %878 = vset.pattern.permute.xlu0 8
      %879 = vperm.xlu0 %878, %v269
      %v880 = vpop.permute.xlu0 %879
      %882 = vset.pattern.permute.xlu0 8
      %883 = vperm.xlu0 %882, %v270
      %v884 = vpop.permute.xlu0 %883
      %v886 = vmul.f32 %v862, %v872
      %v887 = vmul.f32 %v863, %v872
      %v888 = vmul.f32 %v864, %v876
      %v889 = vmul.f32 %v865, %v876
      %v890 = vmul.f32 %v866, %v880
      %v891 = vmul.f32 %v867, %v880
      %v892 = vmul.f32 %v868, %v884
      %v893 = vmul.f32 %v869, %v884
      %v894 = vadd.f32 %v823, %v886
      %v895 = vadd.f32 %v824, %v887
      %v896 = vadd.f32 %v825, %v888
      %v897 = vadd.f32 %v826, %v889
      %v898 = vadd.f32 %v827, %v890
      %v899 = vadd.f32 %v828, %v891
      %v900 = vadd.f32 %v829, %v892
      %v901 = vadd.f32 %v830, %v893
      %v902 = vadd.f32 %v894, %v895
      %903 = vadd.xlane.f32.xlu0 %v902
      %v904 = vpop.xlane.xlu0 %903
      %v905 = vadd.f32 %v896, %v897
      %906 = vadd.xlane.f32.xlu0 %v905
      %v907 = vpop.xlane.xlu0 %906
      %v908 = vadd.f32 %v898, %v899
      %909 = vadd.xlane.f32.xlu0 %v908
      %v910 = vpop.xlane.xlu0 %909
      %v911 = vadd.f32 %v900, %v901
      %912 = vadd.xlane.f32.xlu0 %v911
      %v913 = vpop.xlane.xlu0 %912
      %vm914 = vcmask 7168
      %915 = vst.msk [vmem:[%s247] sm:$0xff] %vm914, %v904
      %916 = vst.msk [vmem:[%s247 + $0x8] sm:$0xff] %vm914, %v907
      %917 = vst.msk [vmem:[%s247 + $0x10] sm:$0xff] %vm914, %v910
      %918 = vst.msk [vmem:[%s247 + $0x18] sm:$0xff] %vm914, %v913
      %v919 = vmul.f32 %v894, %v894
      %v920 = vmul.f32 %v895, %v895
      %v921 = vmul.f32 %v896, %v896
      %v922 = vmul.f32 %v897, %v897
      %v923 = vmul.f32 %v898, %v898
      %v924 = vmul.f32 %v899, %v899
      %v925 = vmul.f32 %v900, %v900
      %v926 = vmul.f32 %v901, %v901
      %v927 = vadd.f32 %v919, %v920
      %928 = vadd.xlane.f32.xlu0 %v927
      %v929 = vpop.xlane.xlu0 %928
      %v930 = vadd.f32 %v921, %v922
      %931 = vadd.xlane.f32.xlu0 %v930
      %v932 = vpop.xlane.xlu0 %931
      %v933 = vadd.f32 %v923, %v924
      %934 = vadd.xlane.f32.xlu0 %v933
      %v935 = vpop.xlane.xlu0 %934
      %v936 = vadd.f32 %v925, %v926
      %937 = vadd.xlane.f32.xlu0 %v936
      %v938 = vpop.xlane.xlu0 %937
      %939 = vst.msk [vmem:[%s257] sm:$0xff] %vm914, %v929
      %940 = vst.msk [vmem:[%s257 + $0x8] sm:$0xff] %vm914, %v932
      %941 = vst.msk [vmem:[%s257 + $0x10] sm:$0xff] %vm914, %v935
      %942 = vst.msk [vmem:[%s257 + $0x18] sm:$0xff] %vm914, %v938
      %s943 = smul.u32 4, %s19
      %p944 = scmp.lt.s32.totalorder %s20, 1
      %s945 = scalar_select %p944, %s20, 1
      %p946 = scmp.lt.s32.totalorder %s943, 3
      %s947 = scalar_select %p946, %s943, 3
      %s948 = smul.addr %s945, 4
      %s949 = sadd.s32 %s947, %s948
      %s950 = smul.addr %s949, 8
      %s951 = scalar_lea.vmem %s2, %s950
      %s952 = smul.u32 4, %s19
      %p953 = scmp.lt.s32.totalorder %s20, 1
      %s954 = scalar_select %p953, %s20, 1
      %p955 = scmp.lt.s32.totalorder %s952, 3
      %s956 = scalar_select %p955, %s952, 3
      %s957 = smul.addr %s954, 4
      %s958 = sadd.s32 %s956, %s957
      %s959 = smul.addr %s958, 8
      %s960 = scalar_lea.vmem %s3, %s959
      // Predicated region
      $region29: #{channel_learnable_pool2d_forward.2} parent=27 // pred_check
        %p961 = pneg %p101
      $region30: #{channel_learnable_pool2d_forward.2} parent=27 // pred_check_branch
        %963 = sbr.rel (%p961) target = $region32
      $region31: #{channel_learnable_pool2d_forward.2} parent=27 // pred_region
        %s964 = smul.u32 4, %s19
      $region32: #{channel_learnable_pool2d_forward.2} parent=27 // pred_fallthru
        _
      // Predicated region
      $region33: #{channel_learnable_pool2d_forward.2} parent=27 // pred_check
        %p965 = pneg %p129
      $region34: #{channel_learnable_pool2d_forward.2} parent=27 // pred_check_branch
        %967 = sbr.rel (%p965) target = $region36
      $region35: #{channel_learnable_pool2d_forward.2} parent=27 // pred_region
        %s968 = smul.u32 4, %s19
      $region36: #{channel_learnable_pool2d_forward.2} parent=27 // pred_fallthru
        _
    $region28: #{channel_learnable_pool2d_forward.2} parent=5 // pred_fallthru
      _
    %p969 = scmp.le.s32.totalorder 2, %s10
    // Predicated region
    $region37: #{channel_learnable_pool2d_forward.2} parent=5 // pred_check
      %p970 = pneg %p969
    $region38: #{channel_learnable_pool2d_forward.2} parent=5 // pred_check_branch
      %972 = sbr.rel (%p970) target = $region40
    $region39: #{channel_learnable_pool2d_forward.2} parent=5 // pred_region
      %s973 = ssub.s32 %s10, 2
      // Predicated region
      $region41: #{channel_learnable_pool2d_forward.2} parent=39 // pred_check
        %p974 = pneg %p107
      $region42: #{channel_learnable_pool2d_forward.2} parent=39 // pred_check_branch
        %976 = sbr.rel (%p974) target = $region44
      $region43: #{channel_learnable_pool2d_forward.2} parent=39 // pred_region
        %s977 = smul.u32 4, %s21
        %p978 = scmp.lt.s32.totalorder %s22, 1
        %s979 = scalar_select %p978, %s22, 1
        %p980 = scmp.lt.s32.totalorder %s977, 3
        %s981 = scalar_select %p980, %s977, 3
        %s982 = smul.addr %s979, 4
        %s983 = sadd.s32 %s981, %s982
        %s984 = smul.addr %s983, 8
        %s985 = scalar_lea.vmem %s2, %s984
      $region44: #{channel_learnable_pool2d_forward.2} parent=39 // pred_fallthru
        _
      // Predicated region
      $region45: #{channel_learnable_pool2d_forward.2} parent=39 // pred_check
        %p986 = pneg %p135
      $region46: #{channel_learnable_pool2d_forward.2} parent=39 // pred_check_branch
        %988 = sbr.rel (%p986) target = $region48
      $region47: #{channel_learnable_pool2d_forward.2} parent=39 // pred_region
        %s989 = smul.u32 4, %s21
        %p990 = scmp.lt.s32.totalorder %s22, 1
        %s991 = scalar_select %p990, %s22, 1
        %p992 = scmp.lt.s32.totalorder %s989, 3
        %s993 = scalar_select %p992, %s989, 3
        %s994 = smul.addr %s991, 4
        %s995 = sadd.s32 %s993, %s994
        %s996 = smul.addr %s995, 8
        %s997 = scalar_lea.vmem %s3, %s996
      $region48: #{channel_learnable_pool2d_forward.2} parent=39 // pred_fallthru
        _
    $region40: #{channel_learnable_pool2d_forward.2} parent=5 // pred_fallthru
      _
  $region6: #{channel_learnable_pool2d_forward.2} parent=0 // loop_footer
    %s14 = sadd.s32 1, %s10
  $region7: #{channel_learnable_pool2d_forward.2} parent=0 // loop_footer_branch
    %9 = sbr.rel target = $region3
  $region8: #{channel_learnable_pool2d_forward.2} parent=0 // loop_exit
    _

// kernel: channel_learnable_pool2d_forward.3
$region0: #{channel_learnable_pool2d_forward.3}
  #allocation0 [shape = 'u32[]', space=smem, size = 0x4, offset = 0x4, fixed_abs, tag = 'smem constant byte address 0x4 - core index']
  #allocation1 [shape = 'u32[144,128]{1,0:T(1,128)}', space=vmem, size = 0x12000, scoped, tag = 'internal scratch']
  %s0 = inlined_call_operand.vmem [shape: f32[2,32,256], index: 0, kind: input, shape index: {}]
  %s1 = inlined_call_operand.vmem [shape: f32[32,9], index: 1, kind: input, shape index: {}]
  %s2 = inlined_call_operand.vmem [shape: f32[32,2], index: 2, kind: input, shape index: {}]
  %s3 = inlined_call_operand.vmem [shape: f32[2,32,256], index: 3, kind: output, shape index: {}]
  %s4 = sld [smem:[#allocation0]]
  $region45: #{channel_learnable_pool2d_forward.3} parent=0
    _
  %s6 = ssub.s32 1, %s4
  %s7 = scalar_select 0, %s6, %s4
  loop: start=0, step=1, limit=4
  $region2: #{channel_learnable_pool2d_forward.3} parent=0 // loop_pre_header
    _
  $region3: #{channel_learnable_pool2d_forward.3} parent=0 // loop_header
    %s9 = sphi 0, %s13
    %p10 = scmp.ge.s32.totalorder %s9, 4
    %s16 = sphi 0, %s28
    %s17 = sphi 0, %s24
    %s18 = sphi 0, %s16
    %s19 = sphi 0, %s17
    %s20 = sphi 0, %s18
    %s21 = sphi 0, %s19
    %s33 = sphi 0, %s35
    %s36 = sphi 0, %s33
    %s37 = sphi 0, %s36
    %s53 = sphi 0, %s37
    %s59 = sphi 0, %s61
    %s62 = sphi 0, %s59
    %s63 = sphi 0, %s62
    %s79 = sphi 0, %s63
    %s85 = sphi 0, %s87
    %s88 = sphi 0, %s85
    %s89 = sphi 0, %s88
    %s105 = sphi 0, %s89
    %s113 = sphi 0, %s115
    %s116 = sphi 0, %s113
    %s117 = sphi 0, %s116
    %s133 = sphi 0, %s117
  $region4: #{channel_learnable_pool2d_forward.3} parent=0 // loop_header_branch
    %12 = sbr.rel (%p10) target = $region8
  $region5: #{channel_learnable_pool2d_forward.3} parent=0 // loop_body
    %s14 = ssub.s32 %s9, 1
    %s15 = ssub.s32 %s9, 2
    %s22 = sadd.s32 1, %s17
    %p23 = scmp.ge.s32.totalorder %s22, 2
    %s24 = scalar_select %p23, 0, %s22
    %s25 = sadd.s32 1, %s16
    %s26 = scalar_select %p23, %s25, %s16
    %p27 = scmp.ge.s32.totalorder %s26, 1
    %s28 = scalar_select %p27, 0, %s26
    %s29 = ssub.s32 %s17, %s24
    %s30 = ssub.s32 %s16, %s28
    %s31 = sor.u32 %s29, %s30
    %p32 = scmp.eq.s32.totalorder %s31, 0
    %s34 = sadd.s32 %s33, 1
    %s35 = scalar_select %p32, %s33, %s34
    %p38 = pneg %p32
    %p39 = scmp.eq.s32.totalorder %s9, 1
    %p40 = por %p38, %p39
    %p41 = scmp.ne.s32.totalorder %s33, %s36
    %p42 = scmp.eq.s32.totalorder %s9, 0
    %p43 = por %p41, %p42
    %p44 = scmp.ne.s32.totalorder %s33, %s36
    %p45 = scmp.eq.s32.totalorder %s14, 1
    %p46 = por %p44, %p45
    %p47 = scmp.ne.s32.totalorder %s36, %s37
    %p48 = scmp.eq.s32.totalorder %s14, 0
    %p49 = por %p47, %p48
    %p50 = scmp.ne.s32.totalorder %s36, %s37
    %p51 = scmp.eq.s32.totalorder %s15, 1
    %p52 = por %p50, %p51
    %p54 = scmp.ne.s32.totalorder %s37, %s53
    %p55 = scmp.eq.s32.totalorder %s15, 0
    %p56 = por %p54, %p55
    %s57 = ssub.s32 %s16, %s28
    %p58 = scmp.eq.s32.totalorder %s57, 0
    %s60 = sadd.s32 %s59, 1
    %s61 = scalar_select %p58, %s59, %s60
    %p64 = pneg %p58
    %p65 = scmp.eq.s32.totalorder %s9, 1
    %p66 = por %p64, %p65
    %p67 = scmp.ne.s32.totalorder %s59, %s62
    %p68 = scmp.eq.s32.totalorder %s9, 0
    %p69 = por %p67, %p68
    %p70 = scmp.ne.s32.totalorder %s59, %s62
    %p71 = scmp.eq.s32.totalorder %s14, 1
    %p72 = por %p70, %p71
    %p73 = scmp.ne.s32.totalorder %s62, %s63
    %p74 = scmp.eq.s32.totalorder %s14, 0
    %p75 = por %p73, %p74
    %p76 = scmp.ne.s32.totalorder %s62, %s63
    %p77 = scmp.eq.s32.totalorder %s15, 1
    %p78 = por %p76, %p77
    %p80 = scmp.ne.s32.totalorder %s63, %s79
    %p81 = scmp.eq.s32.totalorder %s15, 0
    %p82 = por %p80, %p81
    %s83 = ssub.s32 %s16, %s28
    %p84 = scmp.eq.s32.totalorder %s83, 0
    %s86 = sadd.s32 %s85, 1
    %s87 = scalar_select %p84, %s85, %s86
    %p90 = pneg %p84
    %p91 = scmp.eq.s32.totalorder %s9, 1
    %p92 = por %p90, %p91
    %p93 = scmp.ne.s32.totalorder %s85, %s88
    %p94 = scmp.eq.s32.totalorder %s9, 0
    %p95 = por %p93, %p94
    %p96 = scmp.ne.s32.totalorder %s85, %s88
    %p97 = scmp.eq.s32.totalorder %s14, 1
    %p98 = por %p96, %p97
    %p99 = scmp.ne.s32.totalorder %s88, %s89
    %p100 = scmp.eq.s32.totalorder %s14, 0
    %p101 = por %p99, %p100
    %p102 = scmp.ne.s32.totalorder %s88, %s89
    %p103 = scmp.eq.s32.totalorder %s15, 1
    %p104 = por %p102, %p103
    %p106 = scmp.ne.s32.totalorder %s89, %s105
    %p107 = scmp.eq.s32.totalorder %s15, 0
    %p108 = por %p106, %p107
    %s109 = ssub.s32 %s17, %s24
    %s110 = ssub.s32 %s16, %s28
    %s111 = sor.u32 %s109, %s110
    %p112 = scmp.eq.s32.totalorder %s111, 0
    %s114 = sadd.s32 %s113, 1
    %s115 = scalar_select %p112, %s113, %s114
    %p118 = pneg %p112
    %p119 = scmp.eq.s32.totalorder %s9, 1
    %p120 = por %p118, %p119
    %p121 = scmp.ne.s32.totalorder %s113, %s116
    %p122 = scmp.eq.s32.totalorder %s9, 0
    %p123 = por %p121, %p122
    %p124 = scmp.ne.s32.totalorder %s113, %s116
    %p125 = scmp.eq.s32.totalorder %s14, 1
    %p126 = por %p124, %p125
    %p127 = scmp.ne.s32.totalorder %s116, %s117
    %p128 = scmp.eq.s32.totalorder %s14, 0
    %p129 = por %p127, %p128
    %p130 = scmp.ne.s32.totalorder %s116, %s117
    %p131 = scmp.eq.s32.totalorder %s15, 1
    %p132 = por %p130, %p131
    %p134 = scmp.ne.s32.totalorder %s117, %s133
    %p135 = scmp.eq.s32.totalorder %s15, 0
    %p136 = por %p134, %p135
    %p137 = scmp.le.s32.totalorder 1, %s9
    %p138 = scmp.lt.s32.totalorder %s9, 3
    %p139 = pnand %p137, %p138
    %p140 = pneg %p139
    // Predicated region
    $region9: #{channel_learnable_pool2d_forward.3} parent=5 // pred_check
      _
    $region10: #{channel_learnable_pool2d_forward.3} parent=5 // pred_check_branch
      %142 = sbr.rel (%p139) target = $region12
    $region11: #{channel_learnable_pool2d_forward.3} parent=5 // pred_region
      %s143 = ssub.s32 %s9, 1
      // Predicated region
      $region13: #{channel_learnable_pool2d_forward.3} parent=11 // pred_check
        %p144 = pneg %p75
      $region14: #{channel_learnable_pool2d_forward.3} parent=11 // pred_check_branch
        %146 = sbr.rel (%p144) target = $region16
      $region15: #{channel_learnable_pool2d_forward.3} parent=11 // pred_region
        %s147 = smul.u32 4, %s18
        %p148 = scmp.lt.s32.totalorder %s147, 3
        %s149 = scalar_select %p148, %s147, 3
        %s150 = smul.addr %s149, 8
        %s151 = scalar_lea.vmem %s1, %s150
        %s152 = smul.u32 4, %s18
      $region16: #{channel_learnable_pool2d_forward.3} parent=11 // pred_fallthru
        _
      // Predicated region
      $region17: #{channel_learnable_pool2d_forward.3} parent=11 // pred_check
        %p153 = pneg %p101
      $region18: #{channel_learnable_pool2d_forward.3} parent=11 // pred_check_branch
        %155 = sbr.rel (%p153) target = $region20
      $region19: #{channel_learnable_pool2d_forward.3} parent=11 // pred_region
        %s156 = smul.u32 4, %s18
        %p157 = scmp.lt.s32.totalorder %s156, 3
        %s158 = scalar_select %p157, %s156, 3
        %s159 = smul.addr %s158, 8
        %s160 = scalar_lea.vmem %s2, %s159
        %s161 = smul.u32 4, %s18
      $region20: #{channel_learnable_pool2d_forward.3} parent=11 // pred_fallthru
        _
    $region12: #{channel_learnable_pool2d_forward.3} parent=5 // pred_fallthru
      _
    %p162 = scmp.lt.s32.totalorder %s9, 2
    // Predicated region
    $region21: #{channel_learnable_pool2d_forward.3} parent=5 // pred_check
      %p163 = pneg %p162
    $region22: #{channel_learnable_pool2d_forward.3} parent=5 // pred_check_branch
      %165 = sbr.rel (%p163) target = $region24
    $region23: #{channel_learnable_pool2d_forward.3} parent=5 // pred_region
      // Predicated region
      $region25: #{channel_learnable_pool2d_forward.3} parent=23 // pred_check
        %p166 = pneg %p43
      $region26: #{channel_learnable_pool2d_forward.3} parent=23 // pred_check_branch
        %168 = sbr.rel (%p166) target = $region28
      $region27: #{channel_learnable_pool2d_forward.3} parent=23 // pred_region
        %s169 = smul.u32 4, %s16
        %p170 = scmp.lt.s32.totalorder %s17, 1
        %s171 = scalar_select %p170, %s17, 1
        %p172 = scmp.lt.s32.totalorder %s169, 3
        %s173 = scalar_select %p172, %s169, 3
        %s174 = smul.addr %s173, 2
        %s175 = smul.addr %s171, 8
        %s176 = sadd.s32 %s174, %s175
        %s177 = smul.addr %s176, 8
        %s178 = scalar_lea.vmem %s0, %s177
        %s179 = smul.u32 4, %s16
      $region28: #{channel_learnable_pool2d_forward.3} parent=23 // pred_fallthru
        _
    $region24: #{channel_learnable_pool2d_forward.3} parent=5 // pred_fallthru
      _
    %p180 = scmp.le.s32.totalorder 1, %s9
    %p181 = scmp.lt.s32.totalorder %s9, 3
    %p182 = pnand %p180, %p181
    %p183 = pneg %p182
    // Predicated region
    $region29: #{channel_learnable_pool2d_forward.3} parent=5 // pred_check
      _
    $region30: #{channel_learnable_pool2d_forward.3} parent=5 // pred_check_branch
      %185 = sbr.rel (%p182) target = $region32
    $region31: #{channel_learnable_pool2d_forward.3} parent=5 // pred_region
      %s186 = ssub.s32 %s9, 1
      %s187 = smul.u32 4, %s18
      %p188 = scmp.lt.s32.totalorder %s19, 1
      %s189 = scalar_select %p188, %s19, 1
      %p190 = scmp.lt.s32.totalorder %s187, 3
      %s191 = scalar_select %p190, %s187, 3
      %s192 = smul.addr %s191, 2
      %s193 = smul.addr %s189, 8
      %s194 = sadd.s32 %s192, %s193
      %s195 = smul.addr %s194, 8
      %s196 = scalar_lea.vmem %s0, %s195
      %p197 = pneg %p49
      %p198 = pneg %p46
      %s199 = smul.u32 4, %s18
      %p200 = scmp.lt.s32.totalorder %s199, 3
      %s201 = scalar_select %p200, %s199, 3
      %s202 = smul.addr %s201, 8
      %s203 = scalar_lea.vmem %s1, %s202
      %p204 = pneg %p75
      %p205 = pneg %p72
      %s206 = smul.u32 4, %s18
      %p207 = scmp.lt.s32.totalorder %s206, 3
      %s208 = scalar_select %p207, %s206, 3
      %s209 = smul.addr %s208, 8
      %s210 = scalar_lea.vmem %s2, %s209
      %p211 = pneg %p101
      %p212 = pneg %p98
      %p213 = pneg %p129
      %p214 = pneg %p126
      %s215 = smul.u32 4, %s18
      %p216 = scmp.lt.s32.totalorder %s19, 1
      %s217 = scalar_select %p216, %s19, 1
      %p218 = scmp.lt.s32.totalorder %s215, 3
      %s219 = scalar_select %p218, %s215, 3
      %s220 = smul.addr %s219, 2
      %s221 = smul.addr %s217, 8
      %s222 = sadd.s32 %s220, %s221
      %s223 = smul.addr %s222, 8
      %s224 = scalar_lea.vmem %s3, %s223
      %s225 = smul.u32 4, %s18
      %p226 = scmp.lt.s32.totalorder %s19, 1
      %s227 = scalar_select %p226, %s19, 1
      %p228 = scmp.lt.s32.totalorder %s225, 3
      %s229 = scalar_select %p228, %s225, 3
      %s230 = smul.addr %s229, 2
      %s231 = smul.addr %s227, 8
      %s232 = sadd.s32 %s230, %s231
      %s233 = smul.addr %s232, 8
      %s234 = scalar_lea.vmem %s0, %s233
      %s235 = smul.u32 4, %s18
      %s236 = smul.u32 4, %s18
      %p237 = scmp.lt.s32.totalorder %s236, 3
      %s238 = scalar_select %p237, %s236, 3
      %s239 = smul.addr %s238, 8
      %s240 = scalar_lea.vmem %s1, %s239
      %s241 = smul.u32 4, %s18
      %s242 = smul.u32 4, %s18
      %p243 = scmp.lt.s32.totalorder %s242, 3
      %s244 = scalar_select %p243, %s242, 3
      %s245 = smul.addr %s244, 8
      %s246 = scalar_lea.vmem %s2, %s245
      %s247 = smul.u32 4, %s18
      %s248 = smul.u32 4, %s18
      %p249 = scmp.lt.s32.totalorder %s19, 1
      %s250 = scalar_select %p249, %s19, 1
      %p251 = scmp.lt.s32.totalorder %s248, 3
      %s252 = scalar_select %p251, %s248, 3
      %s253 = smul.addr %s252, 2
      %s254 = smul.addr %s250, 8
      %s255 = sadd.s32 %s253, %s254
      %s256 = smul.addr %s255, 8
      %s257 = scalar_lea.vmem %s3, %s256
      %s258 = smul.u32 4, %s18
      %v259 = vld [vmem:[%s234] sm:$0xff]
      %v260 = vld [vmem:[%s234 + $0x8] sm:$0xff]
      %v261 = vld [vmem:[%s234 + $0x10] sm:$0xff]
      %v262 = vld [vmem:[%s234 + $0x18] sm:$0xff]
      %v263 = vld [vmem:[%s234 + $0x20] sm:$0xff]
      %v264 = vld [vmem:[%s234 + $0x28] sm:$0xff]
      %v265 = vld [vmem:[%s234 + $0x30] sm:$0xff]
      %v266 = vld [vmem:[%s234 + $0x38] sm:$0xff]
      %v267 = vld [vmem:[%s240] sm:$0xff]
      %v268 = vld [vmem:[%s240 + $0x8] sm:$0xff]
      %v269 = vld [vmem:[%s240 + $0x10] sm:$0xff]
      %v270 = vld [vmem:[%s240 + $0x18] sm:$0xff]
      %v271 = vlaneseq
      %v272 = vand.u32 %v271, 127
      %v273 = vadd.s32 %v272, 128
      %vm274 = vcmp.lt.s32.totalorder %v272, 0
      %v275 = vsub.s32 0, %v272
      %v276 = vsel %vm274, %v275, %v272
      %v277 = vshrl.u32 %v276, 4
      %v278 = vand.u32 %v276, 15
      %v279 = vsub.s32 0, %v278
      %v280 = vsel %vm274, %v279, %v278
      %vm281 = vcmp.lt.s32.totalorder %v273, 0
      %v282 = vsub.s32 0, %v273
      %v283 = vsel %vm281, %v282, %v273
      %v284 = vshrl.u32 %v283, 4
      %v285 = vand.u32 %v283, 15
      %v286 = vsub.s32 0, %v285
      %v287 = vsel %vm281, %v286, %v285
      %vm288 = vcmp.ne.s32.totalorder %v280, 0
      %vm289 = vcmp.ne.s32.totalorder %v287, 0
      %vm290 = vcmp.lt.s32.totalorder %v280, 0
      %vm291 = vcmp.lt.s32.totalorder %v287, 0
      %vm292 = vmand %vm290, %vm288
      %vm293 = vmand %vm291, %vm289
      %v294 = vadd.s32 %v280, 16
      %v295 = vadd.s32 %v287, 16
      %v296 = vsel %vm292, %v294, %v280
      %v297 = vsel %vm293, %v295, %v287
      %vm298 = vcmp.ge.s32.totalorder %v272, 16
      %vm299 = vcmp.ge.s32.totalorder %v273, 16
      %vm300 = vcmp.lt.s32.totalorder %v272, 240
      %vm301 = vcmp.lt.s32.totalorder %v273, 240
      %vm302 = vcmp.ge.s32.totalorder %v296, 1
      %vm303 = vcmp.ge.s32.totalorder %v297, 1
      %vm304 = vcmp.le.s32.totalorder %v296, 14
      %vm305 = vcmp.le.s32.totalorder %v297, 14
      %306 = vrot.lane.b32.xlu0 %v259, 17
      %v307 = vpop.permute.xlu0 %306
      %308 = vrot.lane.b32.xlu0 %v261, 17
      %v309 = vpop.permute.xlu0 %308
      %310 = vrot.lane.b32.xlu0 %v263, 17
      %v311 = vpop.permute.xlu0 %310
      %312 = vrot.lane.b32.xlu0 %v265, 17
      %v313 = vpop.permute.xlu0 %312
      %314 = vrot.lane.b32.xlu0 %v260, 17
      %v315 = vpop.permute.xlu0 %314
      %316 = vrot.lane.b32.xlu0 %v262, 17
      %v317 = vpop.permute.xlu0 %316
      %318 = vrot.lane.b32.xlu0 %v264, 17
      %v319 = vpop.permute.xlu0 %318
      %320 = vrot.lane.b32.xlu0 %v266, 17
      %v321 = vpop.permute.xlu0 %320
      %vm322 = vcmp.lt.s32.totalorder %v272, 17
      %v323 = vsel %vm322, %v307, %v315
      %v324 = vsel %vm322, %v309, %v317
      %v325 = vsel %vm322, %v311, %v319
      %v326 = vsel %vm322, %v313, %v321
      %v327 = vsel %vm322, %v315, %v307
      %v328 = vsel %vm322, %v317, %v309
      %v329 = vsel %vm322, %v319, %v311
      %v330 = vsel %vm322, %v321, %v313
      %vm331 = vmand %vm298, %vm302
      %vm332 = vmand %vm299, %vm303
      %v333 = vsel %vm331, 1, 0
      %v334 = vsel %vm332, 1, 0
      %vm335 = vcmp.eq.s32.totalorder %v333, 1
      %vm336 = vcmp.eq.s32.totalorder %v334, 1
      %v337 = vsel %vm335, %v327, 0.0
      %v338 = vsel %vm336, %v323, 0.0
      %v339 = vsel %vm335, %v328, 0.0
      %v340 = vsel %vm336, %v324, 0.0
      %v341 = vsel %vm335, %v329, 0.0
      %v342 = vsel %vm336, %v325, 0.0
      %v343 = vsel %vm335, %v330, 0.0
      %v344 = vsel %vm336, %v326, 0.0
      %346 = vset.pattern.permute.xlu0 0
      %347 = vperm.xlu0 %346, %v267
      %v348 = vpop.permute.xlu0 %347
      %351 = vset.pattern.permute.xlu0 0
      %352 = vperm.xlu0 %351, %v268
      %v353 = vpop.permute.xlu0 %352
      %356 = vset.pattern.permute.xlu0 0
      %357 = vperm.xlu0 %356, %v269
      %v358 = vpop.permute.xlu0 %357
      %361 = vset.pattern.permute.xlu0 0
      %362 = vperm.xlu0 %361, %v270
      %v363 = vpop.permute.xlu0 %362
      %v365 = vmul.f32 %v337, %v348
      %v366 = vmul.f32 %v338, %v348
      %v367 = vmul.f32 %v339, %v353
      %v368 = vmul.f32 %v340, %v353
      %v369 = vmul.f32 %v341, %v358
      %v370 = vmul.f32 %v342, %v358
      %v371 = vmul.f32 %v343, %v363
      %v372 = vmul.f32 %v344, %v363
      %v373 = vadd.f32 %v365, 0.0
      %v374 = vadd.f32 %v366, 0.0
      %v375 = vadd.f32 %v367, 0.0
      %v376 = vadd.f32 %v368, 0.0
      %v377 = vadd.f32 %v369, 0.0
      %v378 = vadd.f32 %v370, 0.0
      %v379 = vadd.f32 %v371, 0.0
      %v380 = vadd.f32 %v372, 0.0
      %381 = vrot.lane.b32.xlu0 %v259, 16
      %v382 = vpop.permute.xlu0 %381
      %383 = vrot.lane.b32.xlu0 %v261, 16
      %v384 = vpop.permute.xlu0 %383
      %385 = vrot.lane.b32.xlu0 %v263, 16
      %v386 = vpop.permute.xlu0 %385
      %387 = vrot.lane.b32.xlu0 %v265, 16
      %v388 = vpop.permute.xlu0 %387
      %389 = vrot.lane.b32.xlu0 %v260, 16
      %v390 = vpop.permute.xlu0 %389
      %391 = vrot.lane.b32.xlu0 %v262, 16
      %v392 = vpop.permute.xlu0 %391
      %393 = vrot.lane.b32.xlu0 %v264, 16
      %v394 = vpop.permute.xlu0 %393
      %395 = vrot.lane.b32.xlu0 %v266, 16
      %v396 = vpop.permute.xlu0 %395
      %vm397 = vcmp.lt.s32.totalorder %v272, 16
      %v398 = vsel %vm397, %v382, %v390
      %v399 = vsel %vm397, %v384, %v392
      %v400 = vsel %vm397, %v386, %v394
      %v401 = vsel %vm397, %v388, %v396
      %v402 = vsel %vm397, %v390, %v382
      %v403 = vsel %vm397, %v392, %v384
      %v404 = vsel %vm397, %v394, %v386
      %v405 = vsel %vm397, %v396, %v388
      %v406 = vsel %vm298, 1, 0
      %v407 = vsel %vm299, 1, 0
      %vm408 = vcmp.eq.s32.totalorder %v406, 1
      %vm409 = vcmp.eq.s32.totalorder %v407, 1
      %v410 = vsel %vm408, %v402, 0.0
      %v411 = vsel %vm409, %v398, 0.0
      %v412 = vsel %vm408, %v403, 0.0
      %v413 = vsel %vm409, %v399, 0.0
      %v414 = vsel %vm408, %v404, 0.0
      %v415 = vsel %vm409, %v400, 0.0
      %v416 = vsel %vm408, %v405, 0.0
      %v417 = vsel %vm409, %v401, 0.0
      %418 = vset.pattern.permute.xlu0 1
      %419 = vperm.xlu0 %418, %v267
      %v420 = vpop.permute.xlu0 %419
      %422 = vset.pattern.permute.xlu0 1
      %423 = vperm.xlu0 %422, %v268
      %v424 = vpop.permute.xlu0 %423
      %426 = vset.pattern.permute.xlu0 1
      %427 = vperm.xlu0 %426, %v269
      %v428 = vpop.permute.xlu0 %427
      %430 = vset.pattern.permute.xlu0 1
      %431 = vperm.xlu0 %430, %v270
      %v432 = vpop.permute.xlu0 %431
      %v434 = vmul.f32 %v410, %v420
      %v435 = vmul.f32 %v411, %v420
      %v436 = vmul.f32 %v412, %v424
      %v437 = vmul.f32 %v413, %v424
      %v438 = vmul.f32 %v414, %v428
      %v439 = vmul.f32 %v415, %v428
      %v440 = vmul.f32 %v416, %v432
      %v441 = vmul.f32 %v417, %v432
      %v442 = vadd.f32 %v373, %v434
      %v443 = vadd.f32 %v374, %v435
      %v444 = vadd.f32 %v375, %v436
      %v445 = vadd.f32 %v376, %v437
      %v446 = vadd.f32 %v377, %v438
      %v447 = vadd.f32 %v378, %v439
      %v448 = vadd.f32 %v379, %v440
      %v449 = vadd.f32 %v380, %v441
      %450 = vrot.lane.b32.xlu0 %v259, 15
      %v451 = vpop.permute.xlu0 %450
      %452 = vrot.lane.b32.xlu0 %v261, 15
      %v453 = vpop.permute.xlu0 %452
      %454 = vrot.lane.b32.xlu0 %v263, 15
      %v455 = vpop.permute.xlu0 %454
      %456 = vrot.lane.b32.xlu0 %v265, 15
      %v457 = vpop.permute.xlu0 %456
      %458 = vrot.lane.b32.xlu0 %v260, 15
      %v459 = vpop.permute.xlu0 %458
      %460 = vrot.lane.b32.xlu0 %v262, 15
      %v461 = vpop.permute.xlu0 %460
      %462 = vrot.lane.b32.xlu0 %v264, 15
      %v463 = vpop.permute.xlu0 %462
      %464 = vrot.lane.b32.xlu0 %v266, 15
      %v465 = vpop.permute.xlu0 %464
      %vm466 = vcmp.lt.s32.totalorder %v272, 15
      %v467 = vsel %vm466, %v451, %v459
      %v468 = vsel %vm466, %v453, %v461
      %v469 = vsel %vm466, %v455, %v463
      %v470 = vsel %vm466, %v457, %v465
      %v471 = vsel %vm466, %v459, %v451
      %v472 = vsel %vm466, %v461, %v453
      %v473 = vsel %vm466, %v463, %v455
      %v474 = vsel %vm466, %v465, %v457
      %vm475 = vmand %vm298, %vm304
      %vm476 = vmand %vm299, %vm305
      %v477 = vsel %vm475, 1, 0
      %v478 = vsel %vm476, 1, 0
      %vm479 = vcmp.eq.s32.totalorder %v477, 1
      %vm480 = vcmp.eq.s32.totalorder %v478, 1
      %v481 = vsel %vm479, %v471, 0.0
      %v482 = vsel %vm480, %v467, 0.0
      %v483 = vsel %vm479, %v472, 0.0
      %v484 = vsel %vm480, %v468, 0.0
      %v485 = vsel %vm479, %v473, 0.0
      %v486 = vsel %vm480, %v469, 0.0
      %v487 = vsel %vm479, %v474, 0.0
      %v488 = vsel %vm480, %v470, 0.0
      %489 = vset.pattern.permute.xlu0 2
      %490 = vperm.xlu0 %489, %v267
      %v491 = vpop.permute.xlu0 %490
      %493 = vset.pattern.permute.xlu0 2
      %494 = vperm.xlu0 %493, %v268
      %v495 = vpop.permute.xlu0 %494
      %497 = vset.pattern.permute.xlu0 2
      %498 = vperm.xlu0 %497, %v269
      %v499 = vpop.permute.xlu0 %498
      %501 = vset.pattern.permute.xlu0 2
      %502 = vperm.xlu0 %501, %v270
      %v503 = vpop.permute.xlu0 %502
      %v505 = vmul.f32 %v481, %v491
      %v506 = vmul.f32 %v482, %v491
      %v507 = vmul.f32 %v483, %v495
      %v508 = vmul.f32 %v484, %v495
      %v509 = vmul.f32 %v485, %v499
      %v510 = vmul.f32 %v486, %v499
      %v511 = vmul.f32 %v487, %v503
      %v512 = vmul.f32 %v488, %v503
      %v513 = vadd.f32 %v442, %v505
      %v514 = vadd.f32 %v443, %v506
      %v515 = vadd.f32 %v444, %v507
      %v516 = vadd.f32 %v445, %v508
      %v517 = vadd.f32 %v446, %v509
      %v518 = vadd.f32 %v447, %v510
      %v519 = vadd.f32 %v448, %v511
      %v520 = vadd.f32 %v449, %v512
      %521 = vrot.lane.b32.xlu0 %v259, 1
      %v522 = vpop.permute.xlu0 %521
      %523 = vrot.lane.b32.xlu0 %v261, 1
      %v524 = vpop.permute.xlu0 %523
      %525 = vrot.lane.b32.xlu0 %v263, 1
      %v526 = vpop.permute.xlu0 %525
      %527 = vrot.lane.b32.xlu0 %v265, 1
      %v528 = vpop.permute.xlu0 %527
      %529 = vrot.lane.b32.xlu0 %v260, 1
      %v530 = vpop.permute.xlu0 %529
      %531 = vrot.lane.b32.xlu0 %v262, 1
      %v532 = vpop.permute.xlu0 %531
      %533 = vrot.lane.b32.xlu0 %v264, 1
      %v534 = vpop.permute.xlu0 %533
      %535 = vrot.lane.b32.xlu0 %v266, 1
      %v536 = vpop.permute.xlu0 %535
      %vm537 = vcmp.lt.s32.totalorder %v272, 1
      %v538 = vsel %vm537, %v522, %v530
      %v539 = vsel %vm537, %v524, %v532
      %v540 = vsel %vm537, %v526, %v534
      %v541 = vsel %vm537, %v528, %v536
      %v542 = vsel %vm537, %v530, %v522
      %v543 = vsel %vm537, %v532, %v524
      %v544 = vsel %vm537, %v534, %v526
      %v545 = vsel %vm537, %v536, %v528
      %v546 = vsel %vm302, 1, 0
      %v547 = vsel %vm303, 1, 0
      %vm548 = vcmp.eq.s32.totalorder %v546, 1
      %vm549 = vcmp.eq.s32.totalorder %v547, 1
      %v550 = vsel %vm548, %v542, 0.0
      %v551 = vsel %vm549, %v538, 0.0
      %v552 = vsel %vm548, %v543, 0.0
      %v553 = vsel %vm549, %v539, 0.0
      %v554 = vsel %vm548, %v544, 0.0
      %v555 = vsel %vm549, %v540, 0.0
      %v556 = vsel %vm548, %v545, 0.0
      %v557 = vsel %vm549, %v541, 0.0
      %558 = vset.pattern.permute.xlu0 3
      %559 = vperm.xlu0 %558, %v267
      %v560 = vpop.permute.xlu0 %559
      %562 = vset.pattern.permute.xlu0 3
      %563 = vperm.xlu0 %562, %v268
      %v564 = vpop.permute.xlu0 %563
      %566 = vset.pattern.permute.xlu0 3
      %567 = vperm.xlu0 %566, %v269
      %v568 = vpop.permute.xlu0 %567
      %570 = vset.pattern.permute.xlu0 3
      %571 = vperm.xlu0 %570, %v270
      %v572 = vpop.permute.xlu0 %571
      %v574 = vmul.f32 %v550, %v560
      %v575 = vmul.f32 %v551, %v560
      %v576 = vmul.f32 %v552, %v564
      %v577 = vmul.f32 %v553, %v564
      %v578 = vmul.f32 %v554, %v568
      %v579 = vmul.f32 %v555, %v568
      %v580 = vmul.f32 %v556, %v572
      %v581 = vmul.f32 %v557, %v572
      %v582 = vadd.f32 %v513, %v574
      %v583 = vadd.f32 %v514, %v575
      %v584 = vadd.f32 %v515, %v576
      %v585 = vadd.f32 %v516, %v577
      %v586 = vadd.f32 %v517, %v578
      %v587 = vadd.f32 %v518, %v579
      %v588 = vadd.f32 %v519, %v580
      %v589 = vadd.f32 %v520, %v581
      %590 = vset.pattern.permute.xlu0 4
      %591 = vperm.xlu0 %590, %v267
      %v592 = vpop.permute.xlu0 %591
      %594 = vset.pattern.permute.xlu0 4
      %595 = vperm.xlu0 %594, %v268
      %v596 = vpop.permute.xlu0 %595
      %598 = vset.pattern.permute.xlu0 4
      %599 = vperm.xlu0 %598, %v269
      %v600 = vpop.permute.xlu0 %599
      %602 = vset.pattern.permute.xlu0 4
      %603 = vperm.xlu0 %602, %v270
      %v604 = vpop.permute.xlu0 %603
      %v606 = vmul.f32 %v259, %v592
      %v607 = vmul.f32 %v260, %v592
      %v608 = vmul.f32 %v261, %v596
      %v609 = vmul.f32 %v262, %v596
      %v610 = vmul.f32 %v263, %v600
      %v611 = vmul.f32 %v264, %v600
      %v612 = vmul.f32 %v265, %v604
      %v613 = vmul.f32 %v266, %v604
      %v614 = vadd.f32 %v582, %v606
      %v615 = vadd.f32 %v583, %v607
      %v616 = vadd.f32 %v584, %v608
      %v617 = vadd.f32 %v585, %v609
      %v618 = vadd.f32 %v586, %v610
      %v619 = vadd.f32 %v587, %v611
      %v620 = vadd.f32 %v588, %v612
      %v621 = vadd.f32 %v589, %v613
      %622 = vrot.lane.b32.xlu0 %v259, 127
      %v623 = vpop.permute.xlu0 %622
      %624 = vrot.lane.b32.xlu0 %v261, 127
      %v625 = vpop.permute.xlu0 %624
      %626 = vrot.lane.b32.xlu0 %v263, 127
      %v627 = vpop.permute.xlu0 %626
      %628 = vrot.lane.b32.xlu0 %v265, 127
      %v629 = vpop.permute.xlu0 %628
      %630 = vrot.lane.b32.xlu0 %v260, 127
      %v631 = vpop.permute.xlu0 %630
      %632 = vrot.lane.b32.xlu0 %v262, 127
      %v633 = vpop.permute.xlu0 %632
      %634 = vrot.lane.b32.xlu0 %v264, 127
      %v635 = vpop.permute.xlu0 %634
      %636 = vrot.lane.b32.xlu0 %v266, 127
      %v637 = vpop.permute.xlu0 %636
      %vm638 = vcmp.lt.s32.totalorder %v272, 127
      %v639 = vsel %vm638, %v623, %v631
      %v640 = vsel %vm638, %v625, %v633
      %v641 = vsel %vm638, %v627, %v635
      %v642 = vsel %vm638, %v629, %v637
      %v643 = vsel %vm638, %v631, %v623
      %v644 = vsel %vm638, %v633, %v625
      %v645 = vsel %vm638, %v635, %v627
      %v646 = vsel %vm638, %v637, %v629
      %v647 = vsel %vm304, 1, 0
      %v648 = vsel %vm305, 1, 0
      %vm649 = vcmp.eq.s32.totalorder %v647, 1
      %vm650 = vcmp.eq.s32.totalorder %v648, 1
      %v651 = vsel %vm649, %v639, 0.0
      %v652 = vsel %vm650, %v643, 0.0
      %v653 = vsel %vm649, %v640, 0.0
      %v654 = vsel %vm650, %v644, 0.0
      %v655 = vsel %vm649, %v641, 0.0
      %v656 = vsel %vm650, %v645, 0.0
      %v657 = vsel %vm649, %v642, 0.0
      %v658 = vsel %vm650, %v646, 0.0
      %659 = vset.pattern.permute.xlu0 5
      %660 = vperm.xlu0 %659, %v267
      %v661 = vpop.permute.xlu0 %660
      %663 = vset.pattern.permute.xlu0 5
      %664 = vperm.xlu0 %663, %v268
      %v665 = vpop.permute.xlu0 %664
      %667 = vset.pattern.permute.xlu0 5
      %668 = vperm.xlu0 %667, %v269
      %v669 = vpop.permute.xlu0 %668
      %671 = vset.pattern.permute.xlu0 5
      %672 = vperm.xlu0 %671, %v270
      %v673 = vpop.permute.xlu0 %672
      %v675 = vmul.f32 %v651, %v661
      %v676 = vmul.f32 %v652, %v661
      %v677 = vmul.f32 %v653, %v665
      %v678 = vmul.f32 %v654, %v665
      %v679 = vmul.f32 %v655, %v669
      %v680 = vmul.f32 %v656, %v669
      %v681 = vmul.f32 %v657, %v673
      %v682 = vmul.f32 %v658, %v673
      %v683 = vadd.f32 %v614, %v675
      %v684 = vadd.f32 %v615, %v676
      %v685 = vadd.f32 %v616, %v677
      %v686 = vadd.f32 %v617, %v678
      %v687 = vadd.f32 %v618, %v679
      %v688 = vadd.f32 %v619, %v680
      %v689 = vadd.f32 %v620, %v681
      %v690 = vadd.f32 %v621, %v682
      %691 = vrot.lane.b32.xlu0 %v259, 113
      %v692 = vpop.permute.xlu0 %691
      %693 = vrot.lane.b32.xlu0 %v261, 113
      %v694 = vpop.permute.xlu0 %693
      %695 = vrot.lane.b32.xlu0 %v263, 113
      %v696 = vpop.permute.xlu0 %695
      %697 = vrot.lane.b32.xlu0 %v265, 113
      %v698 = vpop.permute.xlu0 %697
      %699 = vrot.lane.b32.xlu0 %v260, 113
      %v700 = vpop.permute.xlu0 %699
      %701 = vrot.lane.b32.xlu0 %v262, 113
      %v702 = vpop.permute.xlu0 %701
      %703 = vrot.lane.b32.xlu0 %v264, 113
      %v704 = vpop.permute.xlu0 %703
      %705 = vrot.lane.b32.xlu0 %v266, 113
      %v706 = vpop.permute.xlu0 %705
      %vm707 = vcmp.lt.s32.totalorder %v272, 113
      %v708 = vsel %vm707, %v692, %v700
      %v709 = vsel %vm707, %v694, %v702
      %v710 = vsel %vm707, %v696, %v704
      %v711 = vsel %vm707, %v698, %v706
      %v712 = vsel %vm707, %v700, %v692
      %v713 = vsel %vm707, %v702, %v694
      %v714 = vsel %vm707, %v704, %v696
      %v715 = vsel %vm707, %v706, %v698
      %vm716 = vmand %vm300, %vm302
      %vm717 = vmand %vm301, %vm303
      %v718 = vsel %vm716, 1, 0
      %v719 = vsel %vm717, 1, 0
      %vm720 = vcmp.eq.s32.totalorder %v718, 1
      %vm721 = vcmp.eq.s32.totalorder %v719, 1
      %v722 = vsel %vm720, %v708, 0.0
      %v723 = vsel %vm721, %v712, 0.0
      %v724 = vsel %vm720, %v709, 0.0
      %v725 = vsel %vm721, %v713, 0.0
      %v726 = vsel %vm720, %v710, 0.0
      %v727 = vsel %vm721, %v714, 0.0
      %v728 = vsel %vm720, %v711, 0.0
      %v729 = vsel %vm721, %v715, 0.0
      %730 = vset.pattern.permute.xlu0 6
      %731 = vperm.xlu0 %730, %v267
      %v732 = vpop.permute.xlu0 %731
      %734 = vset.pattern.permute.xlu0 6
      %735 = vperm.xlu0 %734, %v268
      %v736 = vpop.permute.xlu0 %735
      %738 = vset.pattern.permute.xlu0 6
      %739 = vperm.xlu0 %738, %v269
      %v740 = vpop.permute.xlu0 %739
      %742 = vset.pattern.permute.xlu0 6
      %743 = vperm.xlu0 %742, %v270
      %v744 = vpop.permute.xlu0 %743
      %v746 = vmul.f32 %v722, %v732
      %v747 = vmul.f32 %v723, %v732
      %v748 = vmul.f32 %v724, %v736
      %v749 = vmul.f32 %v725, %v736
      %v750 = vmul.f32 %v726, %v740
      %v751 = vmul.f32 %v727, %v740
      %v752 = vmul.f32 %v728, %v744
      %v753 = vmul.f32 %v729, %v744
      %v754 = vadd.f32 %v683, %v746
      %v755 = vadd.f32 %v684, %v747
      %v756 = vadd.f32 %v685, %v748
      %v757 = vadd.f32 %v686, %v749
      %v758 = vadd.f32 %v687, %v750
      %v759 = vadd.f32 %v688, %v751
      %v760 = vadd.f32 %v689, %v752
      %v761 = vadd.f32 %v690, %v753
      %762 = vrot.lane.b32.xlu0 %v259, 112
      %v763 = vpop.permute.xlu0 %762
      %764 = vrot.lane.b32.xlu0 %v261, 112
      %v765 = vpop.permute.xlu0 %764
      %766 = vrot.lane.b32.xlu0 %v263, 112
      %v767 = vpop.permute.xlu0 %766
      %768 = vrot.lane.b32.xlu0 %v265, 112
      %v769 = vpop.permute.xlu0 %768
      %770 = vrot.lane.b32.xlu0 %v260, 112
      %v771 = vpop.permute.xlu0 %770
      %772 = vrot.lane.b32.xlu0 %v262, 112
      %v773 = vpop.permute.xlu0 %772
      %774 = vrot.lane.b32.xlu0 %v264, 112
      %v775 = vpop.permute.xlu0 %774
      %776 = vrot.lane.b32.xlu0 %v266, 112
      %v777 = vpop.permute.xlu0 %776
      %vm778 = vcmp.lt.s32.totalorder %v272, 112
      %v779 = vsel %vm778, %v763, %v771
      %v780 = vsel %vm778, %v765, %v773
      %v781 = vsel %vm778, %v767, %v775
      %v782 = vsel %vm778, %v769, %v777
      %v783 = vsel %vm778, %v771, %v763
      %v784 = vsel %vm778, %v773, %v765
      %v785 = vsel %vm778, %v775, %v767
      %v786 = vsel %vm778, %v777, %v769
      %v787 = vsel %vm300, 1, 0
      %v788 = vsel %vm301, 1, 0
      %vm789 = vcmp.eq.s32.totalorder %v787, 1
      %vm790 = vcmp.eq.s32.totalorder %v788, 1
      %v791 = vsel %vm789, %v779, 0.0
      %v792 = vsel %vm790, %v783, 0.0
      %v793 = vsel %vm789, %v780, 0.0
      %v794 = vsel %vm790, %v784, 0.0
      %v795 = vsel %vm789, %v781, 0.0
      %v796 = vsel %vm790, %v785, 0.0
      %v797 = vsel %vm789, %v782, 0.0
      %v798 = vsel %vm790, %v786, 0.0
      %799 = vset.pattern.permute.xlu0 7
      %800 = vperm.xlu0 %799, %v267
      %v801 = vpop.permute.xlu0 %800
      %803 = vset.pattern.permute.xlu0 7
      %804 = vperm.xlu0 %803, %v268
      %v805 = vpop.permute.xlu0 %804
      %807 = vset.pattern.permute.xlu0 7
      %808 = vperm.xlu0 %807, %v269
      %v809 = vpop.permute.xlu0 %808
      %811 = vset.pattern.permute.xlu0 7
      %812 = vperm.xlu0 %811, %v270
      %v813 = vpop.permute.xlu0 %812
      %v815 = vmul.f32 %v791, %v801
      %v816 = vmul.f32 %v792, %v801
      %v817 = vmul.f32 %v793, %v805
      %v818 = vmul.f32 %v794, %v805
      %v819 = vmul.f32 %v795, %v809
      %v820 = vmul.f32 %v796, %v809
      %v821 = vmul.f32 %v797, %v813
      %v822 = vmul.f32 %v798, %v813
      %v823 = vadd.f32 %v754, %v815
      %v824 = vadd.f32 %v755, %v816
      %v825 = vadd.f32 %v756, %v817
      %v826 = vadd.f32 %v757, %v818
      %v827 = vadd.f32 %v758, %v819
      %v828 = vadd.f32 %v759, %v820
      %v829 = vadd.f32 %v760, %v821
      %v830 = vadd.f32 %v761, %v822
      %831 = vrot.lane.b32.xlu0 %v259, 111
      %v832 = vpop.permute.xlu0 %831
      %833 = vrot.lane.b32.xlu0 %v261, 111
      %v834 = vpop.permute.xlu0 %833
      %835 = vrot.lane.b32.xlu0 %v263, 111
      %v836 = vpop.permute.xlu0 %835
      %837 = vrot.lane.b32.xlu0 %v265, 111
      %v838 = vpop.permute.xlu0 %837
      %839 = vrot.lane.b32.xlu0 %v260, 111
      %v840 = vpop.permute.xlu0 %839
      %841 = vrot.lane.b32.xlu0 %v262, 111
      %v842 = vpop.permute.xlu0 %841
      %843 = vrot.lane.b32.xlu0 %v264, 111
      %v844 = vpop.permute.xlu0 %843
      %845 = vrot.lane.b32.xlu0 %v266, 111
      %v846 = vpop.permute.xlu0 %845
      %vm847 = vcmp.lt.s32.totalorder %v272, 111
      %v848 = vsel %vm847, %v832, %v840
      %v849 = vsel %vm847, %v834, %v842
      %v850 = vsel %vm847, %v836, %v844
      %v851 = vsel %vm847, %v838, %v846
      %v852 = vsel %vm847, %v840, %v832
      %v853 = vsel %vm847, %v842, %v834
      %v854 = vsel %vm847, %v844, %v836
      %v855 = vsel %vm847, %v846, %v838
      %vm856 = vmand %vm300, %vm304
      %vm857 = vmand %vm301, %vm305
      %v858 = vsel %vm856, 1, 0
      %v859 = vsel %vm857, 1, 0
      %vm860 = vcmp.eq.s32.totalorder %v858, 1
      %vm861 = vcmp.eq.s32.totalorder %v859, 1
      %v862 = vsel %vm860, %v848, 0.0
      %v863 = vsel %vm861, %v852, 0.0
      %v864 = vsel %vm860, %v849, 0.0
      %v865 = vsel %vm861, %v853, 0.0
      %v866 = vsel %vm860, %v850, 0.0
      %v867 = vsel %vm861, %v854, 0.0
      %v868 = vsel %vm860, %v851, 0.0
      %v869 = vsel %vm861, %v855, 0.0
      %870 = vset.pattern.permute.xlu0 8
      %871 = vperm.xlu0 %870, %v267
      %v872 = vpop.permute.xlu0 %871
      %874 = vset.pattern.permute.xlu0 8
      %875 = vperm.xlu0 %874, %v268
      %v876 = vpop.permute.xlu0 %875
      %878 = vset.pattern.permute.xlu0 8
      %879 = vperm.xlu0 %878, %v269
      %v880 = vpop.permute.xlu0 %879
      %882 = vset.pattern.permute.xlu0 8
      %883 = vperm.xlu0 %882, %v270
      %v884 = vpop.permute.xlu0 %883
      %v886 = vmul.f32 %v862, %v872
      %v887 = vmul.f32 %v863, %v872
      %v888 = vmul.f32 %v864, %v876
      %v889 = vmul.f32 %v865, %v876
      %v890 = vmul.f32 %v866, %v880
      %v891 = vmul.f32 %v867, %v880
      %v892 = vmul.f32 %v868, %v884
      %v893 = vmul.f32 %v869, %v884
      %v894 = vadd.f32 %v823, %v886
      %v895 = vadd.f32 %v824, %v887
      %v896 = vadd.f32 %v825, %v888
      %v897 = vadd.f32 %v826, %v889
      %v898 = vadd.f32 %v827, %v890
      %v899 = vadd.f32 %v828, %v891
      %v900 = vadd.f32 %v829, %v892
      %v901 = vadd.f32 %v830, %v893
      %v902 = vld [vmem:[%s246] sm:$0xff]
      %v903 = vld [vmem:[%s246 + $0x8] sm:$0xff]
      %v904 = vld [vmem:[%s246 + $0x10] sm:$0xff]
      %v905 = vld [vmem:[%s246 + $0x18] sm:$0xff]
      %907 = vset.pattern.permute.xlu0 0
      %908 = vperm.xlu0 %907, %v902
      %v909 = vpop.permute.xlu0 %908
      %912 = vset.pattern.permute.xlu0 0
      %913 = vperm.xlu0 %912, %v903
      %v914 = vpop.permute.xlu0 %913
      %917 = vset.pattern.permute.xlu0 0
      %918 = vperm.xlu0 %917, %v904
      %v919 = vpop.permute.xlu0 %918
      %922 = vset.pattern.permute.xlu0 0
      %923 = vperm.xlu0 %922, %v905
      %v924 = vpop.permute.xlu0 %923
      %v926 = vmul.f32 %v894, %v909
      %v927 = vmul.f32 %v895, %v909
      %v928 = vmul.f32 %v896, %v914
      %v929 = vmul.f32 %v897, %v914
      %v930 = vmul.f32 %v898, %v919
      %v931 = vmul.f32 %v899, %v919
      %v932 = vmul.f32 %v900, %v924
      %v933 = vmul.f32 %v901, %v924
      %934 = vset.pattern.permute.xlu0 1
      %935 = vperm.xlu0 %934, %v902
      %v936 = vpop.permute.xlu0 %935
      %938 = vset.pattern.permute.xlu0 1
      %939 = vperm.xlu0 %938, %v903
      %v940 = vpop.permute.xlu0 %939
      %942 = vset.pattern.permute.xlu0 1
      %943 = vperm.xlu0 %942, %v904
      %v944 = vpop.permute.xlu0 %943
      %946 = vset.pattern.permute.xlu0 1
      %947 = vperm.xlu0 %946, %v905
      %v948 = vpop.permute.xlu0 %947
      %v950 = vadd.f32 %v926, %v936
      %v951 = vadd.f32 %v927, %v936
      %v952 = vadd.f32 %v928, %v940
      %v953 = vadd.f32 %v929, %v940
      %v954 = vadd.f32 %v930, %v944
      %v955 = vadd.f32 %v931, %v944
      %v956 = vadd.f32 %v932, %v948
      %v957 = vadd.f32 %v933, %v948
      %958 = vst [vmem:[%s257] sm:$0xff] %v950
      %959 = vst [vmem:[%s257 + $0x8] sm:$0xff] %v951
      %960 = vst [vmem:[%s257 + $0x10] sm:$0xff] %v952
      %961 = vst [vmem:[%s257 + $0x18] sm:$0xff] %v953
      %962 = vst [vmem:[%s257 + $0x20] sm:$0xff] %v954
      %963 = vst [vmem:[%s257 + $0x28] sm:$0xff] %v955
      %964 = vst [vmem:[%s257 + $0x30] sm:$0xff] %v956
      %965 = vst [vmem:[%s257 + $0x38] sm:$0xff] %v957
      %s966 = smul.u32 4, %s18
      %p967 = scmp.lt.s32.totalorder %s19, 1
      %s968 = scalar_select %p967, %s19, 1
      %p969 = scmp.lt.s32.totalorder %s966, 3
      %s970 = scalar_select %p969, %s966, 3
      %s971 = smul.addr %s970, 2
      %s972 = smul.addr %s968, 8
      %s973 = sadd.s32 %s971, %s972
      %s974 = smul.addr %s973, 8
      %s975 = scalar_lea.vmem %s3, %s974
      // Predicated region
      $region33: #{channel_learnable_pool2d_forward.3} parent=31 // pred_check
        %p976 = pneg %p126
      $region34: #{channel_learnable_pool2d_forward.3} parent=31 // pred_check_branch
        %978 = sbr.rel (%p976) target = $region36
      $region35: #{channel_learnable_pool2d_forward.3} parent=31 // pred_region
        %s979 = smul.u32 4, %s18
      $region36: #{channel_learnable_pool2d_forward.3} parent=31 // pred_fallthru
        _
    $region32: #{channel_learnable_pool2d_forward.3} parent=5 // pred_fallthru
      _
    %p980 = scmp.le.s32.totalorder 2, %s9
    // Predicated region
    $region37: #{channel_learnable_pool2d_forward.3} parent=5 // pred_check
      %p981 = pneg %p980
    $region38: #{channel_learnable_pool2d_forward.3} parent=5 // pred_check_branch
      %983 = sbr.rel (%p981) target = $region40
    $region39: #{channel_learnable_pool2d_forward.3} parent=5 // pred_region
      %s984 = ssub.s32 %s9, 2
      // Predicated region
      $region41: #{channel_learnable_pool2d_forward.3} parent=39 // pred_check
        %p985 = pneg %p132
      $region42: #{channel_learnable_pool2d_forward.3} parent=39 // pred_check_branch
        %987 = sbr.rel (%p985) target = $region44
      $region43: #{channel_learnable_pool2d_forward.3} parent=39 // pred_region
        %s988 = smul.u32 4, %s20
        %p989 = scmp.lt.s32.totalorder %s21, 1
        %s990 = scalar_select %p989, %s21, 1
        %p991 = scmp.lt.s32.totalorder %s988, 3
        %s992 = scalar_select %p991, %s988, 3
        %s993 = smul.addr %s992, 2
        %s994 = smul.addr %s990, 8
        %s995 = sadd.s32 %s993, %s994
        %s996 = smul.addr %s995, 8
        %s997 = scalar_lea.vmem %s3, %s996
      $region44: #{channel_learnable_pool2d_forward.3} parent=39 // pred_fallthru
        _
    $region40: #{channel_learnable_pool2d_forward.3} parent=5 // pred_fallthru
      _
  $region6: #{channel_learnable_pool2d_forward.3} parent=0 // loop_footer
    %s13 = sadd.s32 1, %s9
  $region7: #{channel_learnable_pool2d_forward.3} parent=0 // loop_footer_branch
    %8 = sbr.rel target = $region3
  $region8: #{channel_learnable_pool2d_forward.3} parent=0 // loop_exit
    _

</llo_original>
